<compile_context>
chip_gen: v7x
topology: tpu7x:2x2x1
jax: 0.10.0
libtpu: 0.0.40
codegen_flags: <defaults>
</compile_context>

<pallas_src>
import jax
import jax.numpy as jnp
from jax.experimental import pallas as pl
from jax.experimental.pallas import tpu as pltpu

# ----- model hyper-parameters (from bigram.py) -----
N_EMBD = 32
BLOCK_SIZE = 8                      # T
NUM_HEADS = 4
HEAD_SIZE = N_EMBD // NUM_HEADS     # 8
FF_HIDDEN = 4 * N_EMBD              # 128
VOCAB_SIZE = 65                     # len(set(text)) for the tiny-shakespeare corpus
VOCAB_PAD = 128                     # lane-dense logits / one-hot width
QKV_PAD = 128                       # lane-dense fused QKV output (96 -> 128)


def gpt_forward_kernel(idx_ref, tok_ref, pos_ref, wqkv_ref, w1_ref, b1_ref,
                       wflm_ref, bflm_ref, out_ref):
    """One batch block (BB elements, M = BB*T rows) per grid step.

    idx_ref  : (BB, T) int32      token indices
    tok_ref  : (128, C) f32       token embedding table, rows padded 65 -> 128
    pos_ref  : (T, C)   f32       position embedding table
    wqkv_ref : (C, 128)           fused [Q|K|V] weights, Q cols pre-scaled by C**-0.5,
                                  lane-padded 96 -> 128 (compute dtype)
    w1, b1   : (C, 4C) cdt, (1, 4C) f32
    wflm     : (4C, 128) cdt      W2 @ W_lm_pad   (FF second linear fused with lm_head)
    bflm     : (1, 128)  f32      b2 @ W_lm_pad + b_lm_pad
    out_ref  : (BB*T, 128)        padded logits, compute dtype (lane-dense stores)
    """
    BB, T = idx_ref.shape
    C = tok_ref.shape[1]
    cdt = wqkv_ref.dtype
    M = BB * T

    def mm(a, w):
        # MXU matmul: operands in the weight compute dtype, f32 accumulation.
        return jnp.dot(a.astype(w.dtype), w, preferred_element_type=jnp.float32)

    # ---- embedding lookup fused in-kernel: exact one-hot row select ----
    idx = idx_ref[...]                                                  # (BB, T) int32
    vio = jax.lax.broadcasted_iota(jnp.int32, (BB, T, VOCAB_PAD), 2)
    onehot = jnp.where(vio == idx[:, :, None], 1.0, 0.0)                # (BB, T, 128) f32
    tok = mm(onehot.reshape(M, VOCAB_PAD), tok_ref[...])                # (M, C) f32, exact rows
    x = tok.reshape(BB, T, C) + pos_ref[...][None]                      # tok_emb + pos_emb
    x2d = x.reshape(M, C)

    # ---- fused QKV projection (scale folded into Q columns; lane-padded) ----
    qkv = mm(x2d, wqkv_ref[...]).astype(cdt).reshape(BB, T, QKV_PAD)    # (BB, T, 128)

    # causal mask, shared across heads (diagonal always unmasked -> -inf is NaN-safe)
    row = jax.lax.broadcasted_iota(jnp.int32, (T, T), 0)
    col = jax.lax.broadcasted_iota(jnp.int32, (T, T), 1)
    causal = (row >= col)[None]                                         # (1, T, T)

    head_outs = []
    for h in range(NUM_HEADS):                       # unrolled at trace time (4 heads)
        q = qkv[:, :, h * HEAD_SIZE:(h + 1) * HEAD_SIZE]                # (BB, T, Hs) cdt
        k = qkv[:, :, C + h * HEAD_SIZE:C + (h + 1) * HEAD_SIZE]
        v = qkv[:, :, 2 * C + h * HEAD_SIZE:2 * C + (h + 1) * HEAD_SIZE]
        s = jnp.einsum('btd,bsd->bts', q, k,
                       preferred_element_type=jnp.float32)              # (BB, T, T) f32
        s = jnp.where(causal, s, -jnp.inf)
        e = jnp.exp(s - jnp.max(s, axis=-1, keepdims=True))
        denom = jnp.sum(e, axis=-1, keepdims=True)                      # (BB, T, 1)
        o = jnp.einsum('bts,bsd->btd', e.astype(cdt), v,
                       preferred_element_type=jnp.float32)              # (BB, T, Hs) f32
        # normalize AFTER the p.v matmul: EUP reciprocal, scales (BB,T,Hs) not (BB,T,T)
        head_outs.append(o * pl.reciprocal(denom, approx=True))
    sa = jnp.concatenate(head_outs, axis=-1).reshape(M, C)              # torch.cat head order

    # ---- FeedForward first Linear + ReLU ----
    h1 = jnp.maximum(mm(sa, w1_ref[...]) + b1_ref[...], 0.0)            # (M, 4C) f32

    # ---- fused FF second Linear + lm_head (lane-dense K=128 x N=128 matmul) ----
    logits = mm(h1, wflm_ref[...]) + bflm_ref[...]                      # (M, 128) f32
    out_ref[...] = logits.astype(out_ref.dtype)


def _prep_weights(params, compute_dtype):
    """Fuse QKV (fold attn scale into Q), pad lanes, fuse W2 @ W_lm, cast."""
    C, V, VP = N_EMBD, VOCAB_SIZE, VOCAB_PAD
    f32 = jnp.float32
    scale = C ** (-0.5)                           # reference scales by n_embd, not head_size
    # (H, C, Hs) -> (C, H*Hs), preserving torch.cat([h0..h3], dim=-1) column order
    to_cols = lambda w: jnp.transpose(w, (1, 0, 2)).reshape(C, C)
    wqkv = jnp.concatenate([to_cols(params["wq"]) * scale,
                            to_cols(params["wk"]),
                            to_cols(params["wv"])], axis=-1)             # (C, 3C)
    wqkv = jnp.pad(wqkv, ((0, 0), (0, QKV_PAD - 3 * C)))                 # lane-dense (C, 128)

    # vocab-pad lm_head, then fold the FF second Linear into it (f32, exact math)
    wlm_p = jnp.zeros((C, VP), f32).at[:, :V].set(params["wlm"].astype(f32))
    blm_p = jnp.zeros((1, VP), f32).at[:, :V].set(params["blm"].astype(f32))
    wflm = params["w2"].astype(f32) @ wlm_p                              # (4C, 128)
    bflm = params["b2"].astype(f32) @ wlm_p + blm_p                      # (1, 128)

    # row-pad the token table for the in-kernel one-hot matmul (kept f32: exact select)
    tok = jnp.zeros((VP, C), f32).at[:V].set(params["tok_emb"].astype(f32))

    cast = lambda w: w.astype(compute_dtype)
    return (tok,
            params["pos_emb"].astype(f32),
            cast(wqkv),
            cast(params["w1"]), params["b1"].astype(f32),
            cast(wflm), bflm)


def _pick_batch_block(B):
    """Generation-aware batch block (BB elements per grid step, M = BB*T rows)."""
    try:
        kind = jax.devices()[0].device_kind.lower()
    except Exception:  # pragma: no cover
        kind = ""
    wide_mxu = ("v6" in kind) or ("v7" in kind) or ("7x" in kind)
    bb = 32 if wide_mxu else 16          # M = 256 on v6e/v7x (256-wide MXU), 128 on v5e
    # Large batches: grow BB to amortize ~0.35us/grid-step overhead (VMEM stays tiny).
    while bb < 128 and B >= 8 * bb:
        bb *= 2
    # v7x has 2 TensorCores: keep >= 2 grid steps on the "parallel" axis when possible.
    if ("v7" in kind) or ("7x" in kind):
        while bb > 8 and pl.cdiv(B, bb) < 2:
            bb //= 2
    return max(1, min(bb, B))


def gpt_forward(idx, params, *, compute_dtype=jnp.bfloat16, batch_block=None,
                return_padded=False):
    """idx: (B, T) int indices.  Returns (logits, loss=None)  [targets=None path].

    return_padded=False -> logits sliced to (B, T, vocab) (module semantics).
    return_padded=True  -> lane/batch-padded (Bp, T, 128) logits in compute dtype;
                           consumer masks/ignores pad columns (no extra HBM pass).
    """
    B, T = idx.shape
    assert T <= BLOCK_SIZE, "sequence length exceeds block_size"
    if batch_block is None:
        batch_block = _pick_batch_block(B)
    BB = max(1, min(batch_block, B))
    Bp = pl.cdiv(B, BB) * BB

    idx32 = idx.astype(jnp.int32)
    if Bp != B:
        idx32 = jnp.pad(idx32, ((0, Bp - B), (0, 0)))     # pad rows gather token 0; discarded

    tok, pos, wqkv, w1, b1, wflm, bflm = _prep_weights(params, compute_dtype)
    pos = pos[:T]

    full = lambda shape: pl.BlockSpec(shape, lambda b: (0,) * len(shape))

    out2d = pl.pallas_call(
        gpt_forward_kernel,
        out_shape=jax.ShapeDtypeStruct((Bp * T, VOCAB_PAD), compute_dtype),
        grid_spec=pltpu.PrefetchScalarGridSpec(
            num_scalar_prefetch=0,
            grid=(Bp // BB,),
            in_specs=[
                pl.BlockSpec((BB, T), lambda b: (b, 0)),   # idx block (int32)
                full((VOCAB_PAD, N_EMBD)),                 # token embedding table (row-padded)
                full((T, N_EMBD)),                         # position embedding table
                full((N_EMBD, QKV_PAD)),                   # fused W_qkv (scale folded, lane-padded)
                full((N_EMBD, FF_HIDDEN)),                 # W1
                full((1, FF_HIDDEN)),                      # b1
                full((FF_HIDDEN, VOCAB_PAD)),              # W2 @ W_lm (fused, lane-dense)
                full((1, VOCAB_PAD)),                      # b2 @ W_lm + b_lm
            ],
            out_specs=pl.BlockSpec((BB * T, VOCAB_PAD), lambda b: (b, 0)),
        ),
        compiler_params=pltpu.CompilerParams(dimension_semantics=("parallel",)),
    )(idx32, tok, pos, wqkv, w1, b1, wflm, bflm)

    logits_padded = out2d.reshape(Bp, T, VOCAB_PAD)
    if return_padded:
        return logits_padded, None
    return logits_padded[:B, :, :VOCAB_SIZE], None
    # TODO(synk): cross-entropy loss path (targets) not exercised here.


def init_params(key):
    ks = jax.random.split(key, 10)
    s = 0.02
    return {
        "tok_emb": jax.random.normal(ks[0], (VOCAB_SIZE, N_EMBD), jnp.float32) * s,
        "pos_emb": jax.random.normal(ks[1], (BLOCK_SIZE, N_EMBD), jnp.float32) * s,
        "wq": jax.random.normal(ks[2], (NUM_HEADS, N_EMBD, HEAD_SIZE), jnp.float32) * s,
        "wk": jax.random.normal(ks[3], (NUM_HEADS, N_EMBD, HEAD_SIZE), jnp.float32) * s,
        "wv": jax.random.normal(ks[4], (NUM_HEADS, N_EMBD, HEAD_SIZE), jnp.float32) * s,
        "w1": jax.random.normal(ks[5], (N_EMBD, FF_HIDDEN), jnp.float32) * s,
        "b1": jnp.zeros((1, FF_HIDDEN), jnp.float32),
        "w2": jax.random.normal(ks[6], (FF_HIDDEN, N_EMBD), jnp.float32) * s,
        "b2": jnp.zeros((1, N_EMBD), jnp.float32),
        "wlm": jax.random.normal(ks[7], (N_EMBD, VOCAB_SIZE), jnp.float32) * s,
        "blm": jnp.zeros((1, VOCAB_SIZE), jnp.float32),
    }


def reference_forward(idx, params):
    """Pure-JAX reference mirroring the PyTorch module semantics (f32, unfused)."""
    B, T = idx.shape
    x = params["tok_emb"][idx] + params["pos_emb"][jnp.arange(T)][None]
    mask = jnp.tril(jnp.ones((T, T), jnp.float32)) == 0
    outs = []
    for h in range(NUM_HEADS):
        q = x @ params["wq"][h]
        k = x @ params["wk"][h]
        v = x @ params["wv"][h]
        wei = (q @ jnp.swapaxes(k, -2, -1)) * (N_EMBD ** -0.5)
        wei = jnp.where(mask[None], -jnp.inf, wei)
        wei = jax.nn.softmax(wei, axis=-1)
        outs.append(wei @ v)
    sa = jnp.concatenate(outs, axis=-1)
    h1 = jax.nn.relu(sa @ params["w1"] + params["b1"][0])
    ff = h1 @ params["w2"] + params["b2"][0]
    return ff @ params["wlm"] + params["blm"][0]


if __name__ == "__main__":
    key = jax.random.PRNGKey(0)
    pkey, ik1, ik2 = jax.random.split(key, 3)
    params = init_params(pkey)

    # --- small shape from the module spec: B=2, T=block_size=8 (f32, tight check) ---
    idx_small = jax.random.randint(ik1, (2, BLOCK_SIZE), 0, VOCAB_SIZE, dtype=jnp.int32)
    logits_f32, loss = gpt_forward(idx_small, params, compute_dtype=jnp.float32)
    logits_f32 = jax.block_until_ready(logits_f32)
    ref_small = reference_forward(idx_small, params)
    assert logits_f32.shape == (2, BLOCK_SIZE, VOCAB_SIZE)
    assert loss is None
    assert jnp.allclose(logits_f32, ref_small, atol=1e-5, rtol=1e-5), "f32 mismatch vs reference"

    # --- larger non-multiple batch: batch blocking, padding, bf16 compute + bf16 logits ---
    idx_big = jax.random.randint(ik2, (33, BLOCK_SIZE), 0, VOCAB_SIZE, dtype=jnp.int32)
    logits_bf16, _ = gpt_forward(idx_big, params)             # bf16 operands & output, f32 accum
    logits_bf16 = jax.block_until_ready(logits_bf16)
    ref_big = reference_forward(idx_big, params)
    assert logits_bf16.shape == (33, BLOCK_SIZE, VOCAB_SIZE)
    max_err = jnp.max(jnp.abs(logits_bf16.astype(jnp.float32) - ref_big))
    assert max_err <= 0.15 * jnp.max(jnp.abs(ref_big)) + 1e-6, f"bf16 mismatch: {max_err}"

    # --- padded fast path: no post-kernel vocab/batch slice (writeback-friendly) ---
    padded, _ = gpt_forward(idx_big, params, return_padded=True)
    padded = jax.block_until_ready(padded)
    assert padded.shape[1:] == (BLOCK_SIZE, VOCAB_PAD)
    assert jnp.allclose(padded[:33, :, :VOCAB_SIZE].astype(jnp.float32),
                        logits_bf16.astype(jnp.float32), atol=1e-6)

    print("KERNEL_OK")
</pallas_src>

<mosaic_0001>
module attributes {stable_mosaic.version = 11 : i64} {
  func.func @gpt_forward_kernel(%arg0: i32, %arg1: memref<2x8xi32, #tpu.memory_space<vmem>>, %arg2: memref<128x32xf32, #tpu.memory_space<vmem>>, %arg3: memref<8x32xf32, #tpu.memory_space<vmem>>, %arg4: memref<32x128xf32, #tpu.memory_space<vmem>>, %arg5: memref<32x128xf32, #tpu.memory_space<vmem>>, %arg6: memref<1x128xf32, #tpu.memory_space<vmem>>, %arg7: memref<128x128xf32, #tpu.memory_space<vmem>>, %arg8: memref<1x128xf32, #tpu.memory_space<vmem>>, %arg9: memref<16x128xf32, #tpu.memory_space<vmem>>) attributes {dimension_semantics = [#tpu.dimension_semantics<parallel>], iteration_bounds = array<i64: 1>, scalar_prefetch = 0 : i64, scratch_operands = 0 : i64, tpu.core_type = #tpu.core_type<tc>, window_params = [{transform_indices = @transform_0, window_bounds = array<i64: 2, 8>}, {pipeline_mode = #tpu.pipeline_mode<synchronous>, transform_indices = @transform_1, window_bounds = array<i64: 128, 32>}, {pipeline_mode = #tpu.pipeline_mode<synchronous>, transform_indices = @transform_2, window_bounds = array<i64: 8, 32>}, {pipeline_mode = #tpu.pipeline_mode<synchronous>, transform_indices = @transform_3, window_bounds = array<i64: 32, 128>}, {pipeline_mode = #tpu.pipeline_mode<synchronous>, transform_indices = @transform_4, window_bounds = array<i64: 32, 128>}, {pipeline_mode = #tpu.pipeline_mode<synchronous>, transform_indices = @transform_5, window_bounds = array<i64: 1, 128>}, {pipeline_mode = #tpu.pipeline_mode<synchronous>, transform_indices = @transform_6, window_bounds = array<i64: 128, 128>}, {pipeline_mode = #tpu.pipeline_mode<synchronous>, transform_indices = @transform_7, window_bounds = array<i64: 1, 128>}, {transform_indices = @transform_8, window_bounds = array<i64: 16, 128>}]} {
    %c0 = arith.constant 0 : index
    %c0_0 = arith.constant 0 : index
    %0 = vector.load %arg1[%c0, %c0_0] : memref<2x8xi32, #tpu.memory_space<vmem>>, vector<2x8xi32>
    %1 = tpu.iota {dimensions = array<i32: 2>} : vector<2x8x128xi32>
    %2 = vector.shape_cast %0 : vector<2x8xi32> to vector<2x8x1xi32>
    %3 = vector.broadcast %2 : vector<2x8x1xi32> to vector<2x8x128xi32>
    %4 = arith.cmpi eq, %1, %3 : vector<2x8x128xi32>
    %cst = arith.constant 1.000000e+00 : f32
    %cst_1 = arith.constant 0.000000e+00 : f32
    %5 = vector.broadcast %cst : f32 to vector<2x8x128xf32>
    %6 = vector.broadcast %cst_1 : f32 to vector<2x8x128xf32>
    %7 = arith.select %4, %5, %6 : vector<2x8x128xi1>, vector<2x8x128xf32>
    %8 = vector.shape_cast %7 : vector<2x8x128xf32> to vector<16x128xf32>
    %c0_2 = arith.constant 0 : index
    %c0_3 = arith.constant 0 : index
    %9 = vector.load %arg2[%c0_2, %c0_3] : memref<128x32xf32, #tpu.memory_space<vmem>>, vector<128x32xf32>
    %cst_4 = arith.constant dense<0.000000e+00> : vector<16x32xf32>
    %10 = tpu.matmul %8, %9, %cst_4 {dimension_numbers = #tpu.dot_dimension_numbers<[1], [0], [0], [1], [0, 0, 1, 1], [], []>} : vector<16x128xf32>, vector<128x32xf32>, vector<16x32xf32> -> vector<16x32xf32>
    %11 = vector.shape_cast %10 : vector<16x32xf32> to vector<2x8x32xf32>
    %c0_5 = arith.constant 0 : index
    %c0_6 = arith.constant 0 : index
    %12 = vector.load %arg3[%c0_5, %c0_6] : memref<8x32xf32, #tpu.memory_space<vmem>>, vector<8x32xf32>
    %13 = vector.shape_cast %12 : vector<8x32xf32> to vector<1x8x32xf32>
    %14 = vector.broadcast %13 : vector<1x8x32xf32> to vector<2x8x32xf32>
    %15 = arith.addf %11, %14 : vector<2x8x32xf32>
    %16 = vector.shape_cast %15 : vector<2x8x32xf32> to vector<16x32xf32>
    %c0_7 = arith.constant 0 : index
    %c0_8 = arith.constant 0 : index
    %17 = vector.load %arg4[%c0_7, %c0_8] : memref<32x128xf32, #tpu.memory_space<vmem>>, vector<32x128xf32>
    %cst_9 = arith.constant dense<0.000000e+00> : vector<16x128xf32>
    %18 = tpu.matmul %16, %17, %cst_9 {dimension_numbers = #tpu.dot_dimension_numbers<[1], [0], [0], [1], [0, 0, 1, 1], [], []>} : vector<16x32xf32>, vector<32x128xf32>, vector<16x128xf32> -> vector<16x128xf32>
    %19 = vector.shape_cast %18 : vector<16x128xf32> to vector<2x8x128xf32>
    %20 = tpu.iota {dimensions = array<i32: 0>} : vector<8x8xi32>
    %21 = tpu.iota {dimensions = array<i32: 1>} : vector<8x8xi32>
    %22 = arith.cmpi sge, %20, %21 : vector<8x8xi32>
    %23 = vector.shape_cast %22 : vector<8x8xi1> to vector<1x8x8xi1>
    %24 = vector.extract_strided_slice %19 {offsets = [0, 0, 0], sizes = [2, 8, 8], strides = [1, 1, 1]} : vector<2x8x128xf32> to vector<2x8x8xf32>
    %25 = vector.extract_strided_slice %19 {offsets = [0, 0, 32], sizes = [2, 8, 8], strides = [1, 1, 1]} : vector<2x8x128xf32> to vector<2x8x8xf32>
    %26 = vector.extract_strided_slice %19 {offsets = [0, 0, 64], sizes = [2, 8, 8], strides = [1, 1, 1]} : vector<2x8x128xf32> to vector<2x8x8xf32>
    "tpu.trace_start"() <{level = 10 : i32, message = "btd,bsd->bts"}> : () -> ()
    %cst_10 = arith.constant dense<0.000000e+00> : vector<2x8x8xf32>
    %27 = tpu.matmul %24, %25, %cst_10 {dimension_numbers = #tpu.dot_dimension_numbers<[2], [2], [1], [1], [0, 0, 0, 1, 1, 1], [0], [0]>} : vector<2x8x8xf32>, vector<2x8x8xf32>, vector<2x8x8xf32> -> vector<2x8x8xf32>
    %cst_11 = arith.constant 0xFF800000 : f32
    "tpu.trace_stop"() : () -> ()
    %28 = vector.shape_cast %23 : vector<1x8x8xi1> to vector<1x8x8xi1>
    %29 = vector.broadcast %28 : vector<1x8x8xi1> to vector<2x8x8xi1>
    %30 = vector.broadcast %cst_11 : f32 to vector<2x8x8xf32>
    %31 = arith.select %29, %27, %30 : vector<2x8x8xi1>, vector<2x8x8xf32>
    %cst_12 = arith.constant dense<0xFF800000> : vector<2x8xf32>
    %32 = vector.multi_reduction <maximumf>, %31, %cst_12 [2] : vector<2x8x8xf32> to vector<2x8xf32>
    %33 = vector.shape_cast %32 : vector<2x8xf32> to vector<2x8x1xf32>
    %34 = vector.broadcast %33 : vector<2x8x1xf32> to vector<2x8x8xf32>
    %35 = arith.subf %31, %34 : vector<2x8x8xf32>
    %36 = math.exp %35 : vector<2x8x8xf32>
    %cst_13 = arith.constant dense<0.000000e+00> : vector<2x8xf32>
    %37 = vector.multi_reduction <add>, %36, %cst_13 [2] : vector<2x8x8xf32> to vector<2x8xf32>
    %38 = vector.shape_cast %37 : vector<2x8xf32> to vector<2x8x1xf32>
    "tpu.trace_start"() <{level = 10 : i32, message = "bts,bsd->btd"}> : () -> ()
    %cst_14 = arith.constant dense<0.000000e+00> : vector<2x8x8xf32>
    %39 = tpu.matmul %36, %26, %cst_14 {dimension_numbers = #tpu.dot_dimension_numbers<[2], [1], [1], [2], [0, 0, 0, 1, 1, 2], [0], [0]>} : vector<2x8x8xf32>, vector<2x8x8xf32>, vector<2x8x8xf32> -> vector<2x8x8xf32>
    "tpu.trace_stop"() : () -> ()
    %40 = tpu.reciprocal %38 {approx = true} : vector<2x8x1xf32> -> vector<2x8x1xf32>
    %41 = vector.broadcast %40 : vector<2x8x1xf32> to vector<2x8x8xf32>
    %42 = arith.mulf %39, %41 : vector<2x8x8xf32>
    %43 = vector.extract_strided_slice %19 {offsets = [0, 0, 8], sizes = [2, 8, 8], strides = [1, 1, 1]} : vector<2x8x128xf32> to vector<2x8x8xf32>
    %44 = vector.extract_strided_slice %19 {offsets = [0, 0, 40], sizes = [2, 8, 8], strides = [1, 1, 1]} : vector<2x8x128xf32> to vector<2x8x8xf32>
    %45 = vector.extract_strided_slice %19 {offsets = [0, 0, 72], sizes = [2, 8, 8], strides = [1, 1, 1]} : vector<2x8x128xf32> to vector<2x8x8xf32>
    "tpu.trace_start"() <{level = 10 : i32, message = "btd,bsd->bts"}> : () -> ()
    %cst_15 = arith.constant dense<0.000000e+00> : vector<2x8x8xf32>
    %46 = tpu.matmul %43, %44, %cst_15 {dimension_numbers = #tpu.dot_dimension_numbers<[2], [2], [1], [1], [0, 0, 0, 1, 1, 1], [0], [0]>} : vector<2x8x8xf32>, vector<2x8x8xf32>, vector<2x8x8xf32> -> vector<2x8x8xf32>
    %cst_16 = arith.constant 0xFF800000 : f32
    "tpu.trace_stop"() : () -> ()
    %47 = vector.shape_cast %23 : vector<1x8x8xi1> to vector<1x8x8xi1>
    %48 = vector.broadcast %47 : vector<1x8x8xi1> to vector<2x8x8xi1>
    %49 = vector.broadcast %cst_16 : f32 to vector<2x8x8xf32>
    %50 = arith.select %48, %46, %49 : vector<2x8x8xi1>, vector<2x8x8xf32>
    %cst_17 = arith.constant dense<0xFF800000> : vector<2x8xf32>
    %51 = vector.multi_reduction <maximumf>, %50, %cst_17 [2] : vector<2x8x8xf32> to vector<2x8xf32>
    %52 = vector.shape_cast %51 : vector<2x8xf32> to vector<2x8x1xf32>
    %53 = vector.broadcast %52 : vector<2x8x1xf32> to vector<2x8x8xf32>
    %54 = arith.subf %50, %53 : vector<2x8x8xf32>
    %55 = math.exp %54 : vector<2x8x8xf32>
    %cst_18 = arith.constant dense<0.000000e+00> : vector<2x8xf32>
    %56 = vector.multi_reduction <add>, %55, %cst_18 [2] : vector<2x8x8xf32> to vector<2x8xf32>
    %57 = vector.shape_cast %56 : vector<2x8xf32> to vector<2x8x1xf32>
    "tpu.trace_start"() <{level = 10 : i32, message = "bts,bsd->btd"}> : () -> ()
    %cst_19 = arith.constant dense<0.000000e+00> : vector<2x8x8xf32>
    %58 = tpu.matmul %55, %45, %cst_19 {dimension_numbers = #tpu.dot_dimension_numbers<[2], [1], [1], [2], [0, 0, 0, 1, 1, 2], [0], [0]>} : vector<2x8x8xf32>, vector<2x8x8xf32>, vector<2x8x8xf32> -> vector<2x8x8xf32>
    "tpu.trace_stop"() : () -> ()
    %59 = tpu.reciprocal %57 {approx = true} : vector<2x8x1xf32> -> vector<2x8x1xf32>
    %60 = vector.broadcast %59 : vector<2x8x1xf32> to vector<2x8x8xf32>
    %61 = arith.mulf %58, %60 : vector<2x8x8xf32>
    %62 = vector.extract_strided_slice %19 {offsets = [0, 0, 16], sizes = [2, 8, 8], strides = [1, 1, 1]} : vector<2x8x128xf32> to vector<2x8x8xf32>
    %63 = vector.extract_strided_slice %19 {offsets = [0, 0, 48], sizes = [2, 8, 8], strides = [1, 1, 1]} : vector<2x8x128xf32> to vector<2x8x8xf32>
    %64 = vector.extract_strided_slice %19 {offsets = [0, 0, 80], sizes = [2, 8, 8], strides = [1, 1, 1]} : vector<2x8x128xf32> to vector<2x8x8xf32>
    "tpu.trace_start"() <{level = 10 : i32, message = "btd,bsd->bts"}> : () -> ()
    %cst_20 = arith.constant dense<0.000000e+00> : vector<2x8x8xf32>
    %65 = tpu.matmul %62, %63, %cst_20 {dimension_numbers = #tpu.dot_dimension_numbers<[2], [2], [1], [1], [0, 0, 0, 1, 1, 1], [0], [0]>} : vector<2x8x8xf32>, vector<2x8x8xf32>, vector<2x8x8xf32> -> vector<2x8x8xf32>
    %cst_21 = arith.constant 0xFF800000 : f32
    "tpu.trace_stop"() : () -> ()
    %66 = vector.shape_cast %23 : vector<1x8x8xi1> to vector<1x8x8xi1>
    %67 = vector.broadcast %66 : vector<1x8x8xi1> to vector<2x8x8xi1>
    %68 = vector.broadcast %cst_21 : f32 to vector<2x8x8xf32>
    %69 = arith.select %67, %65, %68 : vector<2x8x8xi1>, vector<2x8x8xf32>
    %cst_22 = arith.constant dense<0xFF800000> : vector<2x8xf32>
    %70 = vector.multi_reduction <maximumf>, %69, %cst_22 [2] : vector<2x8x8xf32> to vector<2x8xf32>
    %71 = vector.shape_cast %70 : vector<2x8xf32> to vector<2x8x1xf32>
    %72 = vector.broadcast %71 : vector<2x8x1xf32> to vector<2x8x8xf32>
    %73 = arith.subf %69, %72 : vector<2x8x8xf32>
    %74 = math.exp %73 : vector<2x8x8xf32>
    %cst_23 = arith.constant dense<0.000000e+00> : vector<2x8xf32>
    %75 = vector.multi_reduction <add>, %74, %cst_23 [2] : vector<2x8x8xf32> to vector<2x8xf32>
    %76 = vector.shape_cast %75 : vector<2x8xf32> to vector<2x8x1xf32>
    "tpu.trace_start"() <{level = 10 : i32, message = "bts,bsd->btd"}> : () -> ()
    %cst_24 = arith.constant dense<0.000000e+00> : vector<2x8x8xf32>
    %77 = tpu.matmul %74, %64, %cst_24 {dimension_numbers = #tpu.dot_dimension_numbers<[2], [1], [1], [2], [0, 0, 0, 1, 1, 2], [0], [0]>} : vector<2x8x8xf32>, vector<2x8x8xf32>, vector<2x8x8xf32> -> vector<2x8x8xf32>
    "tpu.trace_stop"() : () -> ()
    %78 = tpu.reciprocal %76 {approx = true} : vector<2x8x1xf32> -> vector<2x8x1xf32>
    %79 = vector.broadcast %78 : vector<2x8x1xf32> to vector<2x8x8xf32>
    %80 = arith.mulf %77, %79 : vector<2x8x8xf32>
    %81 = vector.extract_strided_slice %19 {offsets = [0, 0, 24], sizes = [2, 8, 8], strides = [1, 1, 1]} : vector<2x8x128xf32> to vector<2x8x8xf32>
    %82 = vector.extract_strided_slice %19 {offsets = [0, 0, 56], sizes = [2, 8, 8], strides = [1, 1, 1]} : vector<2x8x128xf32> to vector<2x8x8xf32>
    %83 = vector.extract_strided_slice %19 {offsets = [0, 0, 88], sizes = [2, 8, 8], strides = [1, 1, 1]} : vector<2x8x128xf32> to vector<2x8x8xf32>
    "tpu.trace_start"() <{level = 10 : i32, message = "btd,bsd->bts"}> : () -> ()
    %cst_25 = arith.constant dense<0.000000e+00> : vector<2x8x8xf32>
    %84 = tpu.matmul %81, %82, %cst_25 {dimension_numbers = #tpu.dot_dimension_numbers<[2], [2], [1], [1], [0, 0, 0, 1, 1, 1], [0], [0]>} : vector<2x8x8xf32>, vector<2x8x8xf32>, vector<2x8x8xf32> -> vector<2x8x8xf32>
    %cst_26 = arith.constant 0xFF800000 : f32
    "tpu.trace_stop"() : () -> ()
    %85 = vector.shape_cast %23 : vector<1x8x8xi1> to vector<1x8x8xi1>
    %86 = vector.broadcast %85 : vector<1x8x8xi1> to vector<2x8x8xi1>
    %87 = vector.broadcast %cst_26 : f32 to vector<2x8x8xf32>
    %88 = arith.select %86, %84, %87 : vector<2x8x8xi1>, vector<2x8x8xf32>
    %cst_27 = arith.constant dense<0xFF800000> : vector<2x8xf32>
    %89 = vector.multi_reduction <maximumf>, %88, %cst_27 [2] : vector<2x8x8xf32> to vector<2x8xf32>
    %90 = vector.shape_cast %89 : vector<2x8xf32> to vector<2x8x1xf32>
    %91 = vector.broadcast %90 : vector<2x8x1xf32> to vector<2x8x8xf32>
    %92 = arith.subf %88, %91 : vector<2x8x8xf32>
    %93 = math.exp %92 : vector<2x8x8xf32>
    %cst_28 = arith.constant dense<0.000000e+00> : vector<2x8xf32>
    %94 = vector.multi_reduction <add>, %93, %cst_28 [2] : vector<2x8x8xf32> to vector<2x8xf32>
    %95 = vector.shape_cast %94 : vector<2x8xf32> to vector<2x8x1xf32>
    "tpu.trace_start"() <{level = 10 : i32, message = "bts,bsd->btd"}> : () -> ()
    %cst_29 = arith.constant dense<0.000000e+00> : vector<2x8x8xf32>
    %96 = tpu.matmul %93, %83, %cst_29 {dimension_numbers = #tpu.dot_dimension_numbers<[2], [1], [1], [2], [0, 0, 0, 1, 1, 2], [0], [0]>} : vector<2x8x8xf32>, vector<2x8x8xf32>, vector<2x8x8xf32> -> vector<2x8x8xf32>
    "tpu.trace_stop"() : () -> ()
    %97 = tpu.reciprocal %95 {approx = true} : vector<2x8x1xf32> -> vector<2x8x1xf32>
    %98 = vector.broadcast %97 : vector<2x8x1xf32> to vector<2x8x8xf32>
    %99 = arith.mulf %96, %98 : vector<2x8x8xf32>
    %100 = tpu.concatenate %42, %61, %80, %99 in 2 : vector<2x8x8xf32>, vector<2x8x8xf32>, vector<2x8x8xf32>, vector<2x8x8xf32> -> vector<2x8x32xf32>
    %101 = vector.shape_cast %100 : vector<2x8x32xf32> to vector<16x32xf32>
    %c0_30 = arith.constant 0 : index
    %c0_31 = arith.constant 0 : index
    %102 = vector.load %arg5[%c0_30, %c0_31] : memref<32x128xf32, #tpu.memory_space<vmem>>, vector<32x128xf32>
    %cst_32 = arith.constant dense<0.000000e+00> : vector<16x128xf32>
    %103 = tpu.matmul %101, %102, %cst_32 {dimension_numbers = #tpu.dot_dimension_numbers<[1], [0], [0], [1], [0, 0, 1, 1], [], []>} : vector<16x32xf32>, vector<32x128xf32>, vector<16x128xf32> -> vector<16x128xf32>
    %c0_33 = arith.constant 0 : index
    %c0_34 = arith.constant 0 : index
    %104 = vector.load %arg6[%c0_33, %c0_34] : memref<1x128xf32, #tpu.memory_space<vmem>>, vector<1x128xf32>
    %105 = vector.broadcast %104 : vector<1x128xf32> to vector<16x128xf32>
    %106 = arith.addf %103, %105 : vector<16x128xf32>
    %cst_35 = arith.constant 0.000000e+00 : f32
    %107 = vector.broadcast %cst_35 : f32 to vector<16x128xf32>
    %108 = arith.maximumf %106, %107 : vector<16x128xf32>
    %c0_36 = arith.constant 0 : index
    %c0_37 = arith.constant 0 : index
    %109 = vector.load %arg7[%c0_36, %c0_37] : memref<128x128xf32, #tpu.memory_space<vmem>>, vector<128x128xf32>
    %cst_38 = arith.constant dense<0.000000e+00> : vector<16x128xf32>
    %110 = tpu.matmul %108, %109, %cst_38 {dimension_numbers = #tpu.dot_dimension_numbers<[1], [0], [0], [1], [0, 0, 1, 1], [], []>} : vector<16x128xf32>, vector<128x128xf32>, vector<16x128xf32> -> vector<16x128xf32>
    %c0_39 = arith.constant 0 : index
    %c0_40 = arith.constant 0 : index
    %111 = vector.load %arg8[%c0_39, %c0_40] : memref<1x128xf32, #tpu.memory_space<vmem>>, vector<1x128xf32>
    %112 = vector.broadcast %111 : vector<1x128xf32> to vector<16x128xf32>
    %113 = arith.addf %110, %112 : vector<16x128xf32>
    %c0_41 = arith.constant 0 : index
    %c0_42 = arith.constant 0 : index
    %114 = vector.load %arg9[%c0_41, %c0_42] : memref<16x128xf32, #tpu.memory_space<vmem>>, vector<16x128xf32>
    tpu.vector_store %arg9[%c0_41, %c0_42], %113 {strides = array<i32>} : memref<16x128xf32, #tpu.memory_space<vmem>>, vector<16x128xf32>,
    return
  }
  func.func @transform_0(%arg0: i32) -> (i32, i32) {
    %c0_i32 = arith.constant 0 : i32
    %c0_i32_0 = arith.constant 0 : i32
    return %arg0, %c0_i32 : i32, i32
  }
  func.func @transform_1(%arg0: i32) -> (i32, i32) {
    %c0_i32 = arith.constant 0 : i32
    %c0_i32_0 = arith.constant 0 : i32
    %c0_i32_1 = arith.constant 0 : i32
    return %c0_i32, %c0_i32_0 : i32, i32
  }
  func.func @transform_2(%arg0: i32) -> (i32, i32) {
    %c0_i32 = arith.constant 0 : i32
    %c0_i32_0 = arith.constant 0 : i32
    %c0_i32_1 = arith.constant 0 : i32
    return %c0_i32, %c0_i32_0 : i32, i32
  }
  func.func @transform_3(%arg0: i32) -> (i32, i32) {
    %c0_i32 = arith.constant 0 : i32
    %c0_i32_0 = arith.constant 0 : i32
    %c0_i32_1 = arith.constant 0 : i32
    return %c0_i32, %c0_i32_0 : i32, i32
  }
  func.func @transform_4(%arg0: i32) -> (i32, i32) {
    %c0_i32 = arith.constant 0 : i32
    %c0_i32_0 = arith.constant 0 : i32
    %c0_i32_1 = arith.constant 0 : i32
    return %c0_i32, %c0_i32_0 : i32, i32
  }
  func.func @transform_5(%arg0: i32) -> (i32, i32) {
    %c0_i32 = arith.constant 0 : i32
    %c0_i32_0 = arith.constant 0 : i32
    %c0_i32_1 = arith.constant 0 : i32
    return %c0_i32, %c0_i32_0 : i32, i32
  }
  func.func @transform_6(%arg0: i32) -> (i32, i32) {
    %c0_i32 = arith.constant 0 : i32
    %c0_i32_0 = arith.constant 0 : i32
    %c0_i32_1 = arith.constant 0 : i32
    return %c0_i32, %c0_i32_0 : i32, i32
  }
  func.func @transform_7(%arg0: i32) -> (i32, i32) {
    %c0_i32 = arith.constant 0 : i32
    %c0_i32_0 = arith.constant 0 : i32
    %c0_i32_1 = arith.constant 0 : i32
    return %c0_i32, %c0_i32_0 : i32, i32
  }
  func.func @transform_8(%arg0: i32) -> (i32, i32) {
    %c0_i32 = arith.constant 0 : i32
    %c0_i32_0 = arith.constant 0 : i32
    return %arg0, %c0_i32 : i32, i32
  }
}

</mosaic_0001>

<llo_original>
// kernel: tpu_custom_call.1
$region0: #{tpu_custom_call.1}
  #allocation0 [shape = 'u32[]', space=smem, size = 0x4, offset = 0x4, fixed_abs, tag = 'smem constant byte address 0x4 - core index']
  #allocation1 [shape = 'u32[144,128]{1,0:T(1,128)}', space=vmem, size = 0x12000, scoped, tag = 'internal scratch']
  %s0 = inlined_call_operand.vmem [shape: s32[2,8], index: 0, kind: input, shape index: {}]
  %s1 = inlined_call_operand.vmem [shape: f32[128,32], index: 1, kind: input, shape index: {}]
  %s2 = inlined_call_operand.vmem [shape: f32[8,32], index: 2, kind: input, shape index: {}]
  %s3 = inlined_call_operand.vmem [shape: f32[32,128], index: 3, kind: input, shape index: {}]
  %s4 = inlined_call_operand.hbm [shape: f32[32,128], index: 4, kind: input, shape index: {}]
  %s5 = inlined_call_operand.vmem [shape: f32[1,128], index: 5, kind: input, shape index: {}]
  %s6 = inlined_call_operand.vmem [shape: f32[128,128], index: 6, kind: input, shape index: {}]
  %s7 = inlined_call_operand.vmem [shape: f32[1,128], index: 7, kind: input, shape index: {}]
  %s8 = inlined_call_operand.hbm [shape: f32[16,128], index: 8, kind: output, shape index: {}]
  %s9 = sld [smem:[#allocation0]]
  $region46: #{tpu_custom_call.1} parent=0
    _
  %s11 = ssub.s32 1, %s9
  %s12 = scalar_select 0, %s11, %s9
  $region1: #{tpu_custom_call.1} parent=0
    #allocation2 [shape = 'u8[16384]{0}', space=vmem, size = 0x4000, scoped, tag = 'input window, operand 4, single buffered']
    #allocation3 [shape = 's32[1]{0}', space=sflag, size = 0x4, scoped, tag = 'scoped memory for tpu_custom_call.1']
    #allocation4 [shape = 's32[1]{0}', space=sflag, size = 0x4, scoped, tag = 'scoped memory for tpu_custom_call.1']
    #allocation5 [shape = 'u8[8192]{0}', space=vmem, size = 0x2000, scoped, tag = 'output window, operand 0, single buffered']
    %13 = vsyncpa [#allocation3], 0
    %14 = vsyncpa [#allocation4], 0
    // Predicated region
    $region2: #{tpu_custom_call.1} parent=1 // pred_check
      _
    $region3: #{tpu_custom_call.1} parent=1 // pred_check_branch
      %16 = sbr.rel (0) target = $region5
    $region4: #{tpu_custom_call.1} parent=1 // pred_region
      _
    $region5: #{tpu_custom_call.1} parent=1 // pred_fallthru
      _
    // Predicated region
    $region6: #{tpu_custom_call.1} parent=1 // pred_check
      _
    $region7: #{tpu_custom_call.1} parent=1 // pred_check_branch
      %18 = sbr.rel (0) target = $region9
    $region8: #{tpu_custom_call.1} parent=1 // pred_region
      _
    $region9: #{tpu_custom_call.1} parent=1 // pred_fallthru
      _
    // Predicated region
    $region10: #{tpu_custom_call.1} parent=1 // pred_check
      _
    $region11: #{tpu_custom_call.1} parent=1 // pred_check_branch
      %20 = sbr.rel (0) target = $region13
    $region12: #{tpu_custom_call.1} parent=1 // pred_region
      _
    $region13: #{tpu_custom_call.1} parent=1 // pred_fallthru
      _
    // Predicated region
    $region14: #{tpu_custom_call.1} parent=1 // pred_check
      _
    $region15: #{tpu_custom_call.1} parent=1 // pred_check_branch
      %22 = sbr.rel (0) target = $region17
    $region16: #{tpu_custom_call.1} parent=1 // pred_region
      _
    $region17: #{tpu_custom_call.1} parent=1 // pred_fallthru
      _
    // Predicated region
    $region18: #{tpu_custom_call.1} parent=1 // pred_check
      _
    $region19: #{tpu_custom_call.1} parent=1 // pred_check_branch
      %24 = sbr.rel (0) target = $region21
    $region20: #{tpu_custom_call.1} parent=1 // pred_region
      %s26 = ssub.s32 512, 512
      %27 = vsyncadd [#allocation3], %s26
      %s28 = sshll.u32 [#allocation2], 4
      %s29 = int_to_ptr.vmem [resolvable:$true] %s28
      %34 = dma.hbm_to_vmem [thread:$0]  %s4, 512, %s29, [#allocation3], 128, 128, 8
    $region21: #{tpu_custom_call.1} parent=1 // pred_fallthru
      _
    // Predicated region
    $region22: #{tpu_custom_call.1} parent=1 // pred_check
      _
    $region23: #{tpu_custom_call.1} parent=1 // pred_check_branch
      %36 = sbr.rel (0) target = $region25
    $region24: #{tpu_custom_call.1} parent=1 // pred_region
      _
    $region25: #{tpu_custom_call.1} parent=1 // pred_fallthru
      _
    // Predicated region
    $region26: #{tpu_custom_call.1} parent=1 // pred_check
      _
    $region27: #{tpu_custom_call.1} parent=1 // pred_check_branch
      %38 = sbr.rel (0) target = $region29
    $region28: #{tpu_custom_call.1} parent=1 // pred_region
      _
    $region29: #{tpu_custom_call.1} parent=1 // pred_fallthru
      _
    // Predicated region
    $region30: #{tpu_custom_call.1} parent=1 // pred_check
      _
    $region31: #{tpu_custom_call.1} parent=1 // pred_check_branch
      %40 = sbr.rel (0) target = $region33
    $region32: #{tpu_custom_call.1} parent=1 // pred_region
      _
    $region33: #{tpu_custom_call.1} parent=1 // pred_fallthru
      _
    // Predicated region
    $region34: #{tpu_custom_call.1} parent=1 // pred_check
      _
    $region35: #{tpu_custom_call.1} parent=1 // pred_check_branch
      %42 = sbr.rel (0) target = $region37
    $region36: #{tpu_custom_call.1} parent=1 // pred_region
      %43 = dma.done [#allocation3], 512
    $region37: #{tpu_custom_call.1} parent=1 // pred_fallthru
      _
    %v44 = vld [vmem:[%s0] sm:$0x3]
    %v45 = vlaneseq
    %v46 = vand.u32 %v45, 127
    %v47 = vlaneseq
    %v48 = vshrl.u32 %v47, 7
    %v49 = vsub.s32 0, %v48
    %v50 = vrot.slane %v44, %v49
    %52 = vbcast.lane.b32.xlu0 %v50, 256
    %v53 = vpop.permute.xlu0 %52
    %v54 = vlaneseq
    %v55 = vshrl.u32 %v54, 7
    %v56 = vsub.s32 1, %v55
    %v57 = vrot.slane %v44, %v56
    %59 = vbcast.lane.b32.xlu0 %v57, 256
    %v60 = vpop.permute.xlu0 %59
    %vm61 = vcmp.eq.s32.totalorder %v46, %v53
    %vm62 = vcmp.eq.s32.totalorder %v46, %v60
    %v63 = vsel %vm61, 1.0, 0.0
    %v64 = vsel %vm62, 1.0, 0.0
    %v65 = vld [vmem:[%s1] sm:$0xff]
    %v66 = vld [vmem:[%s1 + $0x8] sm:$0xff]
    %v67 = vld [vmem:[%s1 + $0x10] sm:$0xff]
    %v68 = vld [vmem:[%s1 + $0x18] sm:$0xff]
    %v69 = vld [vmem:[%s1 + $0x20] sm:$0xff]
    %v70 = vld [vmem:[%s1 + $0x28] sm:$0xff]
    %v71 = vld [vmem:[%s1 + $0x30] sm:$0xff]
    %v72 = vld [vmem:[%s1 + $0x38] sm:$0xff]
    %v73 = vld [vmem:[%s1 + $0x40] sm:$0xff]
    %v74 = vld [vmem:[%s1 + $0x48] sm:$0xff]
    %v75 = vld [vmem:[%s1 + $0x50] sm:$0xff]
    %v76 = vld [vmem:[%s1 + $0x58] sm:$0xff]
    %v77 = vld [vmem:[%s1 + $0x60] sm:$0xff]
    %v78 = vld [vmem:[%s1 + $0x68] sm:$0xff]
    %v79 = vld [vmem:[%s1 + $0x70] sm:$0xff]
    %v80 = vld [vmem:[%s1 + $0x78] sm:$0xff]
    %81 = vmatprep.subr.mxu0 0.0
    %82 = vmatpush1.msra.mxu0 %v65
    %83 = vmatprep.subr.mxu0 0.0
    %84 = vmatpush1.msra.mxu0 %v66
    %85 = vmatprep.subr.mxu0 0.0
    %86 = vmatpush1.msra.mxu0 %v67
    %87 = vmatprep.subr.mxu0 0.0
    %88 = vmatpush1.msra.mxu0 %v68
    %89 = vmatprep.subr.mxu0 0.0
    %90 = vmatpush1.msra.mxu0 %v69
    %91 = vmatprep.subr.mxu0 0.0
    %92 = vmatpush1.msra.mxu0 %v70
    %93 = vmatprep.subr.mxu0 0.0
    %94 = vmatpush1.msra.mxu0 %v71
    %95 = vmatprep.subr.mxu0 0.0
    %96 = vmatpush1.msra.mxu0 %v72
    %97 = vmatprep.subr.mxu0 0.0
    %98 = vmatpush1.msra.mxu0 %v73
    %99 = vmatprep.subr.mxu0 0.0
    %100 = vmatpush1.msra.mxu0 %v74
    %101 = vmatprep.subr.mxu0 0.0
    %102 = vmatpush1.msra.mxu0 %v75
    %103 = vmatprep.subr.mxu0 0.0
    %104 = vmatpush1.msra.mxu0 %v76
    %105 = vmatprep.subr.mxu0 0.0
    %106 = vmatpush1.msra.mxu0 %v77
    %107 = vmatprep.subr.mxu0 0.0
    %108 = vmatpush1.msra.mxu0 %v78
    %109 = vmatprep.subr.mxu0 0.0
    %110 = vmatpush1.msra.mxu0 %v79
    %111 = vmatprep.subr.mxu0 0.0
    %112 = vmatpush1.msra.mxu0 %v80
    %113 = vmatprep.subr.mxu0 0.0
    %114 = vmatpush1.msra.mxu0 0.0
    %115 = vmatprep.subr.mxu0 0.0
    %116 = vmatpush1.msra.mxu0 0.0
    %117 = vmatprep.subr.mxu0 0.0
    %118 = vmatpush1.msra.mxu0 0.0
    %119 = vmatprep.subr.mxu0 0.0
    %120 = vmatpush1.msra.mxu0 0.0
    %121 = vmatprep.subr.mxu0 0.0
    %122 = vmatpush1.msra.mxu0 0.0
    %123 = vmatprep.subr.mxu0 0.0
    %124 = vmatpush1.msra.mxu0 0.0
    %125 = vmatprep.subr.mxu0 0.0
    %126 = vmatpush1.msra.mxu0 0.0
    %127 = vmatprep.subr.mxu0 0.0
    %128 = vmatpush1.msra.mxu0 0.0
    %129 = vmatprep.subr.mxu0 0.0
    %130 = vmatpush1.msra.mxu0 0.0
    %131 = vmatprep.subr.mxu0 0.0
    %132 = vmatpush1.msra.mxu0 0.0
    %133 = vmatprep.subr.mxu0 0.0
    %134 = vmatpush1.msra.mxu0 0.0
    %135 = vmatprep.subr.mxu0 0.0
    %136 = vmatpush1.msra.mxu0 0.0
    %137 = vmatprep.subr.mxu0 0.0
    %138 = vmatpush1.msra.mxu0 0.0
    %139 = vmatprep.subr.mxu0 0.0
    %140 = vmatpush1.msra.mxu0 0.0
    %141 = vmatprep.subr.mxu0 0.0
    %142 = vmatpush1.msra.mxu0 0.0
    %143 = vmatprep.subr.mxu0 0.0
    %144 = vmatpush1.msra.mxu0 0.0
    %145 = vmatprep.mubr.f32.mxu0 0.0
    %146 = vmatmul.mubr.f32.gmra.mrb[0].mxu0 %v63
    %v147 = vpop.f32.mrb[0].mxu0
    %v148 = vadd.f32 0.0, %v147
    %v149 = vpop.f32.mrb[0].mxu0
    %150 = vmatprep.mubr.f32.mxu0 0.0
    %151 = vmatmul.mubr.f32.gmra.mrb[0].mxu0 %v64
    %v152 = vpop.f32.mrb[0].mxu0
    %v153 = vadd.f32 0.0, %v152
    %v154 = vpop.f32.mrb[0].mxu0
    %155 = vdwg.mxu0
    %v156 = vld [vmem:[%s2] sm:$0xff]
    %v157 = vadd.f32 %v148, %v156
    %v158 = vadd.f32 %v153, %v156
    %v159 = vld [vmem:[%s3] sm:$0xff]
    %v160 = vld [vmem:[%s3 + $0x8] sm:$0xff]
    %v161 = vld [vmem:[%s3 + $0x10] sm:$0xff]
    %v162 = vld [vmem:[%s3 + $0x18] sm:$0xff]
    %vm163 = vcmask 261120
    %v165 = vsel %vm163, %v157, 0
    %v168 = vsel %vm163, %v158, 0
    %170 = vmatprep.subr.mxu0 0.0
    %171 = vmatpush1.msra.mxu0 %v159
    %172 = vmatprep.subr.mxu0 0.0
    %173 = vmatpush1.msra.mxu0 %v160
    %174 = vmatprep.subr.mxu0 0.0
    %175 = vmatpush1.msra.mxu0 %v161
    %176 = vmatprep.subr.mxu0 0.0
    %177 = vmatpush1.msra.mxu0 %v162
    %178 = vmatprep.subr.mxu0 0.0
    %179 = vmatpush1.msra.mxu0 0.0
    %180 = vmatprep.subr.mxu0 0.0
    %181 = vmatpush1.msra.mxu0 0.0
    %182 = vmatprep.subr.mxu0 0.0
    %183 = vmatpush1.msra.mxu0 0.0
    %184 = vmatprep.subr.mxu0 0.0
    %185 = vmatpush1.msra.mxu0 0.0
    %186 = vmatprep.subr.mxu0 0.0
    %187 = vmatpush1.msra.mxu0 0.0
    %188 = vmatprep.subr.mxu0 0.0
    %189 = vmatpush1.msra.mxu0 0.0
    %190 = vmatprep.subr.mxu0 0.0
    %191 = vmatpush1.msra.mxu0 0.0
    %192 = vmatprep.subr.mxu0 0.0
    %193 = vmatpush1.msra.mxu0 0.0
    %194 = vmatprep.subr.mxu0 0.0
    %195 = vmatpush1.msra.mxu0 0.0
    %196 = vmatprep.subr.mxu0 0.0
    %197 = vmatpush1.msra.mxu0 0.0
    %198 = vmatprep.subr.mxu0 0.0
    %199 = vmatpush1.msra.mxu0 0.0
    %200 = vmatprep.subr.mxu0 0.0
    %201 = vmatpush1.msra.mxu0 0.0
    %202 = vmatprep.subr.mxu0 0.0
    %203 = vmatpush1.msra.mxu0 0.0
    %204 = vmatprep.subr.mxu0 0.0
    %205 = vmatpush1.msra.mxu0 0.0
    %206 = vmatprep.subr.mxu0 0.0
    %207 = vmatpush1.msra.mxu0 0.0
    %208 = vmatprep.subr.mxu0 0.0
    %209 = vmatpush1.msra.mxu0 0.0
    %210 = vmatprep.subr.mxu0 0.0
    %211 = vmatpush1.msra.mxu0 0.0
    %212 = vmatprep.subr.mxu0 0.0
    %213 = vmatpush1.msra.mxu0 0.0
    %214 = vmatprep.subr.mxu0 0.0
    %215 = vmatpush1.msra.mxu0 0.0
    %216 = vmatprep.subr.mxu0 0.0
    %217 = vmatpush1.msra.mxu0 0.0
    %218 = vmatprep.subr.mxu0 0.0
    %219 = vmatpush1.msra.mxu0 0.0
    %220 = vmatprep.subr.mxu0 0.0
    %221 = vmatpush1.msra.mxu0 0.0
    %222 = vmatprep.subr.mxu0 0.0
    %223 = vmatpush1.msra.mxu0 0.0
    %224 = vmatprep.subr.mxu0 0.0
    %225 = vmatpush1.msra.mxu0 0.0
    %226 = vmatprep.subr.mxu0 0.0
    %227 = vmatpush1.msra.mxu0 0.0
    %228 = vmatprep.subr.mxu0 0.0
    %229 = vmatpush1.msra.mxu0 0.0
    %230 = vmatprep.subr.mxu0 0.0
    %231 = vmatpush1.msra.mxu0 0.0
    %232 = vmatprep.subr.mxu0 0.0
    %233 = vmatpush1.msra.mxu0 0.0
    %234 = vmatprep.mubr.f32.mxu0 0.0
    %235 = vmatmul.mubr.f32.gmra.mrb[0].mxu0 %v165
    %v236 = vpop.f32.mrb[0].mxu0
    %v237 = vadd.f32 0.0, %v236
    %v238 = vpop.f32.mrb[0].mxu0
    %239 = vmatprep.mubr.f32.mxu0 0.0
    %240 = vmatmul.mubr.f32.gmra.mrb[0].mxu0 %v168
    %v241 = vpop.f32.mrb[0].mxu0
    %v242 = vadd.f32 0.0, %v241
    %v243 = vpop.f32.mrb[0].mxu0
    %244 = vdwg.mxu0
    %v245 = vlaneseq
    %v246 = vshrl.u32 %v245, 7
    %vm247 = vcmp.ge.s32.totalorder %v246, %v46
    %249 = vrot.lane.b32.xlu0 %v237, 96
    %v250 = vpop.permute.xlu0 %249
    %vm251 = vcmask 64512
    %v252 = vsel %vm251, %v237, 0
    %v254 = vsel %vm251, %v250, 0
    %256 = vmatprep.subr.mxu0 0.0
    %257 = vmatpush1.xpose.msra.mxu0 %v254
    %258 = vmatprep.subr.mxu0 0.0
    %259 = vmatpush1.xpose.msra.mxu0 0.0
    %260 = vmatprep.subr.mxu0 0.0
    %261 = vmatpush1.xpose.msra.mxu0 0.0
    %262 = vmatprep.subr.mxu0 0.0
    %263 = vmatpush1.xpose.msra.mxu0 0.0
    %264 = vmatprep.subr.mxu0 0.0
    %265 = vmatpush1.xpose.msra.mxu0 0.0
    %266 = vmatprep.subr.mxu0 0.0
    %267 = vmatpush1.xpose.msra.mxu0 0.0
    %268 = vmatprep.subr.mxu0 0.0
    %269 = vmatpush1.xpose.msra.mxu0 0.0
    %270 = vmatprep.subr.mxu0 0.0
    %271 = vmatpush1.xpose.msra.mxu0 0.0
    %272 = vmatprep.subr.mxu0 0.0
    %273 = vmatpush1.xpose.msra.mxu0 0.0
    %274 = vmatprep.subr.mxu0 0.0
    %275 = vmatpush1.xpose.msra.mxu0 0.0
    %276 = vmatprep.subr.mxu0 0.0
    %277 = vmatpush1.xpose.msra.mxu0 0.0
    %278 = vmatprep.subr.mxu0 0.0
    %279 = vmatpush1.xpose.msra.mxu0 0.0
    %280 = vmatprep.subr.mxu0 0.0
    %281 = vmatpush1.xpose.msra.mxu0 0.0
    %282 = vmatprep.subr.mxu0 0.0
    %283 = vmatpush1.xpose.msra.mxu0 0.0
    %284 = vmatprep.subr.mxu0 0.0
    %285 = vmatpush1.xpose.msra.mxu0 0.0
    %286 = vmatprep.subr.mxu0 0.0
    %287 = vmatpush1.xpose.msra.mxu0 0.0
    %288 = vmatprep.subr.mxu0 0.0
    %289 = vmatpush1.xpose.msra.mxu0 0.0
    %290 = vmatprep.subr.mxu0 0.0
    %291 = vmatpush1.xpose.msra.mxu0 0.0
    %292 = vmatprep.subr.mxu0 0.0
    %293 = vmatpush1.xpose.msra.mxu0 0.0
    %294 = vmatprep.subr.mxu0 0.0
    %295 = vmatpush1.xpose.msra.mxu0 0.0
    %296 = vmatprep.subr.mxu0 0.0
    %297 = vmatpush1.xpose.msra.mxu0 0.0
    %298 = vmatprep.subr.mxu0 0.0
    %299 = vmatpush1.xpose.msra.mxu0 0.0
    %300 = vmatprep.subr.mxu0 0.0
    %301 = vmatpush1.xpose.msra.mxu0 0.0
    %302 = vmatprep.subr.mxu0 0.0
    %303 = vmatpush1.xpose.msra.mxu0 0.0
    %304 = vmatprep.subr.mxu0 0.0
    %305 = vmatpush1.xpose.msra.mxu0 0.0
    %306 = vmatprep.subr.mxu0 0.0
    %307 = vmatpush1.xpose.msra.mxu0 0.0
    %308 = vmatprep.subr.mxu0 0.0
    %309 = vmatpush1.xpose.msra.mxu0 0.0
    %310 = vmatprep.subr.mxu0 0.0
    %311 = vmatpush1.xpose.msra.mxu0 0.0
    %312 = vmatprep.subr.mxu0 0.0
    %313 = vmatpush1.xpose.msra.mxu0 0.0
    %314 = vmatprep.subr.mxu0 0.0
    %315 = vmatpush1.xpose.msra.mxu0 0.0
    %316 = vmatprep.subr.mxu0 0.0
    %317 = vmatpush1.xpose.msra.mxu0 0.0
    %318 = vmatprep.subr.mxu0 0.0
    %319 = vmatpush1.xpose.msra.mxu0 0.0
    %320 = vmatprep.mubr.f32.mxu0 0.0
    %321 = vmatmul.mubr.f32.gmra.mrb[0].mxu0 %v252
    %v322 = vpop.f32.mrb[0].mxu0
    %v323 = vadd.f32 0.0, %v322
    %v324 = vpop.f32.mrb[0].mxu0
    %325 = vdwg.mxu0
    %327 = vrot.lane.b32.xlu0 %v242, 96
    %v328 = vpop.permute.xlu0 %327
    %v329 = vsel %vm251, %v242, 0
    %v331 = vsel %vm251, %v328, 0
    %333 = vmatprep.subr.mxu0 0.0
    %334 = vmatpush1.xpose.msra.mxu0 %v331
    %335 = vmatprep.subr.mxu0 0.0
    %336 = vmatpush1.xpose.msra.mxu0 0.0
    %337 = vmatprep.subr.mxu0 0.0
    %338 = vmatpush1.xpose.msra.mxu0 0.0
    %339 = vmatprep.subr.mxu0 0.0
    %340 = vmatpush1.xpose.msra.mxu0 0.0
    %341 = vmatprep.subr.mxu0 0.0
    %342 = vmatpush1.xpose.msra.mxu0 0.0
    %343 = vmatprep.subr.mxu0 0.0
    %344 = vmatpush1.xpose.msra.mxu0 0.0
    %345 = vmatprep.subr.mxu0 0.0
    %346 = vmatpush1.xpose.msra.mxu0 0.0
    %347 = vmatprep.subr.mxu0 0.0
    %348 = vmatpush1.xpose.msra.mxu0 0.0
    %349 = vmatprep.subr.mxu0 0.0
    %350 = vmatpush1.xpose.msra.mxu0 0.0
    %351 = vmatprep.subr.mxu0 0.0
    %352 = vmatpush1.xpose.msra.mxu0 0.0
    %353 = vmatprep.subr.mxu0 0.0
    %354 = vmatpush1.xpose.msra.mxu0 0.0
    %355 = vmatprep.subr.mxu0 0.0
    %356 = vmatpush1.xpose.msra.mxu0 0.0
    %357 = vmatprep.subr.mxu0 0.0
    %358 = vmatpush1.xpose.msra.mxu0 0.0
    %359 = vmatprep.subr.mxu0 0.0
    %360 = vmatpush1.xpose.msra.mxu0 0.0
    %361 = vmatprep.subr.mxu0 0.0
    %362 = vmatpush1.xpose.msra.mxu0 0.0
    %363 = vmatprep.subr.mxu0 0.0
    %364 = vmatpush1.xpose.msra.mxu0 0.0
    %365 = vmatprep.subr.mxu0 0.0
    %366 = vmatpush1.xpose.msra.mxu0 0.0
    %367 = vmatprep.subr.mxu0 0.0
    %368 = vmatpush1.xpose.msra.mxu0 0.0
    %369 = vmatprep.subr.mxu0 0.0
    %370 = vmatpush1.xpose.msra.mxu0 0.0
    %371 = vmatprep.subr.mxu0 0.0
    %372 = vmatpush1.xpose.msra.mxu0 0.0
    %373 = vmatprep.subr.mxu0 0.0
    %374 = vmatpush1.xpose.msra.mxu0 0.0
    %375 = vmatprep.subr.mxu0 0.0
    %376 = vmatpush1.xpose.msra.mxu0 0.0
    %377 = vmatprep.subr.mxu0 0.0
    %378 = vmatpush1.xpose.msra.mxu0 0.0
    %379 = vmatprep.subr.mxu0 0.0
    %380 = vmatpush1.xpose.msra.mxu0 0.0
    %381 = vmatprep.subr.mxu0 0.0
    %382 = vmatpush1.xpose.msra.mxu0 0.0
    %383 = vmatprep.subr.mxu0 0.0
    %384 = vmatpush1.xpose.msra.mxu0 0.0
    %385 = vmatprep.subr.mxu0 0.0
    %386 = vmatpush1.xpose.msra.mxu0 0.0
    %387 = vmatprep.subr.mxu0 0.0
    %388 = vmatpush1.xpose.msra.mxu0 0.0
    %389 = vmatprep.subr.mxu0 0.0
    %390 = vmatpush1.xpose.msra.mxu0 0.0
    %391 = vmatprep.subr.mxu0 0.0
    %392 = vmatpush1.xpose.msra.mxu0 0.0
    %393 = vmatprep.subr.mxu0 0.0
    %394 = vmatpush1.xpose.msra.mxu0 0.0
    %395 = vmatprep.subr.mxu0 0.0
    %396 = vmatpush1.xpose.msra.mxu0 0.0
    %397 = vmatprep.mubr.f32.mxu0 0.0
    %398 = vmatmul.mubr.f32.gmra.mrb[0].mxu0 %v329
    %v399 = vpop.f32.mrb[0].mxu0
    %v400 = vadd.f32 0.0, %v399
    %v401 = vpop.f32.mrb[0].mxu0
    %402 = vdwg.mxu0
    %v403 = vsel %vm247, 1, 0
    %vm404 = vcmp.eq.s32.totalorder %v403, 1
    %v405 = vsel %vm404, %v323, -inf
    %v406 = vsel %vm404, %v400, -inf
    %v407 = vsel %vm251, %v405, -inf
    %408 = vmax.xlane.f32.xlu0 %v407
    %v409 = vpop.xlane.xlu0 %408
    %v410 = vsel %vm251, %v406, -inf
    %411 = vmax.xlane.f32.xlu0 %v410
    %v412 = vpop.xlane.xlu0 %411
    %v413 = vsub.f32 %v405, %v409
    %v414 = vsub.f32 %v406, %v412
    %v415 = vmul.f32 %v413, 1.442695
    %v416 = vpow.pop %v415
    %v417 = vmul.f32 %v414, 1.442695
    %v418 = vpow.pop %v417
    %v419 = vsel %vm251, %v416, 0.0
    %420 = vadd.xlane.f32.xlu0 %v419
    %v421 = vpop.xlane.xlu0 %420
    %v422 = vsel %vm251, %v418, 0.0
    %423 = vadd.xlane.f32.xlu0 %v422
    %v424 = vpop.xlane.xlu0 %423
    %425 = vrot.lane.b32.xlu0 %v237, 64
    %v426 = vpop.permute.xlu0 %425
    %v429 = vsel %vm251, %v416, 0
    %431 = vmatprep.subr.mxu0 0.0
    %432 = vmatpush1.msra.mxu0 %v426
    %433 = vmatprep.subr.mxu0 0.0
    %434 = vmatpush1.msra.mxu0 0.0
    %435 = vmatprep.subr.mxu0 0.0
    %436 = vmatpush1.msra.mxu0 0.0
    %437 = vmatprep.subr.mxu0 0.0
    %438 = vmatpush1.msra.mxu0 0.0
    %439 = vmatprep.subr.mxu0 0.0
    %440 = vmatpush1.msra.mxu0 0.0
    %441 = vmatprep.subr.mxu0 0.0
    %442 = vmatpush1.msra.mxu0 0.0
    %443 = vmatprep.subr.mxu0 0.0
    %444 = vmatpush1.msra.mxu0 0.0
    %445 = vmatprep.subr.mxu0 0.0
    %446 = vmatpush1.msra.mxu0 0.0
    %447 = vmatprep.subr.mxu0 0.0
    %448 = vmatpush1.msra.mxu0 0.0
    %449 = vmatprep.subr.mxu0 0.0
    %450 = vmatpush1.msra.mxu0 0.0
    %451 = vmatprep.subr.mxu0 0.0
    %452 = vmatpush1.msra.mxu0 0.0
    %453 = vmatprep.subr.mxu0 0.0
    %454 = vmatpush1.msra.mxu0 0.0
    %455 = vmatprep.subr.mxu0 0.0
    %456 = vmatpush1.msra.mxu0 0.0
    %457 = vmatprep.subr.mxu0 0.0
    %458 = vmatpush1.msra.mxu0 0.0
    %459 = vmatprep.subr.mxu0 0.0
    %460 = vmatpush1.msra.mxu0 0.0
    %461 = vmatprep.subr.mxu0 0.0
    %462 = vmatpush1.msra.mxu0 0.0
    %463 = vmatprep.subr.mxu0 0.0
    %464 = vmatpush1.msra.mxu0 0.0
    %465 = vmatprep.subr.mxu0 0.0
    %466 = vmatpush1.msra.mxu0 0.0
    %467 = vmatprep.subr.mxu0 0.0
    %468 = vmatpush1.msra.mxu0 0.0
    %469 = vmatprep.subr.mxu0 0.0
    %470 = vmatpush1.msra.mxu0 0.0
    %471 = vmatprep.subr.mxu0 0.0
    %472 = vmatpush1.msra.mxu0 0.0
    %473 = vmatprep.subr.mxu0 0.0
    %474 = vmatpush1.msra.mxu0 0.0
    %475 = vmatprep.subr.mxu0 0.0
    %476 = vmatpush1.msra.mxu0 0.0
    %477 = vmatprep.subr.mxu0 0.0
    %478 = vmatpush1.msra.mxu0 0.0
    %479 = vmatprep.subr.mxu0 0.0
    %480 = vmatpush1.msra.mxu0 0.0
    %481 = vmatprep.subr.mxu0 0.0
    %482 = vmatpush1.msra.mxu0 0.0
    %483 = vmatprep.subr.mxu0 0.0
    %484 = vmatpush1.msra.mxu0 0.0
    %485 = vmatprep.subr.mxu0 0.0
    %486 = vmatpush1.msra.mxu0 0.0
    %487 = vmatprep.subr.mxu0 0.0
    %488 = vmatpush1.msra.mxu0 0.0
    %489 = vmatprep.subr.mxu0 0.0
    %490 = vmatpush1.msra.mxu0 0.0
    %491 = vmatprep.subr.mxu0 0.0
    %492 = vmatpush1.msra.mxu0 0.0
    %493 = vmatprep.subr.mxu0 0.0
    %494 = vmatpush1.msra.mxu0 0.0
    %495 = vmatprep.mubr.f32.mxu0 0.0
    %496 = vmatmul.mubr.f32.gmra.mrb[0].mxu0 %v429
    %v497 = vpop.f32.mrb[0].mxu0
    %v498 = vadd.f32 0.0, %v497
    %v499 = vpop.f32.mrb[0].mxu0
    %500 = vdwg.mxu0
    %501 = vrot.lane.b32.xlu0 %v242, 64
    %v502 = vpop.permute.xlu0 %501
    %v505 = vsel %vm251, %v418, 0
    %507 = vmatprep.subr.mxu0 0.0
    %508 = vmatpush1.msra.mxu0 %v502
    %509 = vmatprep.subr.mxu0 0.0
    %510 = vmatpush1.msra.mxu0 0.0
    %511 = vmatprep.subr.mxu0 0.0
    %512 = vmatpush1.msra.mxu0 0.0
    %513 = vmatprep.subr.mxu0 0.0
    %514 = vmatpush1.msra.mxu0 0.0
    %515 = vmatprep.subr.mxu0 0.0
    %516 = vmatpush1.msra.mxu0 0.0
    %517 = vmatprep.subr.mxu0 0.0
    %518 = vmatpush1.msra.mxu0 0.0
    %519 = vmatprep.subr.mxu0 0.0
    %520 = vmatpush1.msra.mxu0 0.0
    %521 = vmatprep.subr.mxu0 0.0
    %522 = vmatpush1.msra.mxu0 0.0
    %523 = vmatprep.subr.mxu0 0.0
    %524 = vmatpush1.msra.mxu0 0.0
    %525 = vmatprep.subr.mxu0 0.0
    %526 = vmatpush1.msra.mxu0 0.0
    %527 = vmatprep.subr.mxu0 0.0
    %528 = vmatpush1.msra.mxu0 0.0
    %529 = vmatprep.subr.mxu0 0.0
    %530 = vmatpush1.msra.mxu0 0.0
    %531 = vmatprep.subr.mxu0 0.0
    %532 = vmatpush1.msra.mxu0 0.0
    %533 = vmatprep.subr.mxu0 0.0
    %534 = vmatpush1.msra.mxu0 0.0
    %535 = vmatprep.subr.mxu0 0.0
    %536 = vmatpush1.msra.mxu0 0.0
    %537 = vmatprep.subr.mxu0 0.0
    %538 = vmatpush1.msra.mxu0 0.0
    %539 = vmatprep.subr.mxu0 0.0
    %540 = vmatpush1.msra.mxu0 0.0
    %541 = vmatprep.subr.mxu0 0.0
    %542 = vmatpush1.msra.mxu0 0.0
    %543 = vmatprep.subr.mxu0 0.0
    %544 = vmatpush1.msra.mxu0 0.0
    %545 = vmatprep.subr.mxu0 0.0
    %546 = vmatpush1.msra.mxu0 0.0
    %547 = vmatprep.subr.mxu0 0.0
    %548 = vmatpush1.msra.mxu0 0.0
    %549 = vmatprep.subr.mxu0 0.0
    %550 = vmatpush1.msra.mxu0 0.0
    %551 = vmatprep.subr.mxu0 0.0
    %552 = vmatpush1.msra.mxu0 0.0
    %553 = vmatprep.subr.mxu0 0.0
    %554 = vmatpush1.msra.mxu0 0.0
    %555 = vmatprep.subr.mxu0 0.0
    %556 = vmatpush1.msra.mxu0 0.0
    %557 = vmatprep.subr.mxu0 0.0
    %558 = vmatpush1.msra.mxu0 0.0
    %559 = vmatprep.subr.mxu0 0.0
    %560 = vmatpush1.msra.mxu0 0.0
    %561 = vmatprep.subr.mxu0 0.0
    %562 = vmatpush1.msra.mxu0 0.0
    %563 = vmatprep.subr.mxu0 0.0
    %564 = vmatpush1.msra.mxu0 0.0
    %565 = vmatprep.subr.mxu0 0.0
    %566 = vmatpush1.msra.mxu0 0.0
    %567 = vmatprep.subr.mxu0 0.0
    %568 = vmatpush1.msra.mxu0 0.0
    %569 = vmatprep.subr.mxu0 0.0
    %570 = vmatpush1.msra.mxu0 0.0
    %571 = vmatprep.mubr.f32.mxu0 0.0
    %572 = vmatmul.mubr.f32.gmra.mrb[0].mxu0 %v505
    %v573 = vpop.f32.mrb[0].mxu0
    %v574 = vadd.f32 0.0, %v573
    %v575 = vpop.f32.mrb[0].mxu0
    %576 = vdwg.mxu0
    %v577 = vrcp.pop %v421
    %v578 = vrcp.pop %v424
    %v579 = vmul.f32 %v498, %v577
    %v580 = vmul.f32 %v574, %v578
    %581 = vrot.lane.b32.xlu0 %v237, 120
    %v582 = vpop.permute.xlu0 %581
    %583 = vrot.lane.b32.xlu0 %v237, 88
    %v584 = vpop.permute.xlu0 %583
    %v585 = vsel %vm251, %v582, 0
    %v587 = vsel %vm251, %v584, 0
    %589 = vmatprep.subr.mxu0 0.0
    %590 = vmatpush1.xpose.msra.mxu0 %v587
    %591 = vmatprep.subr.mxu0 0.0
    %592 = vmatpush1.xpose.msra.mxu0 0.0
    %593 = vmatprep.subr.mxu0 0.0
    %594 = vmatpush1.xpose.msra.mxu0 0.0
    %595 = vmatprep.subr.mxu0 0.0
    %596 = vmatpush1.xpose.msra.mxu0 0.0
    %597 = vmatprep.subr.mxu0 0.0
    %598 = vmatpush1.xpose.msra.mxu0 0.0
    %599 = vmatprep.subr.mxu0 0.0
    %600 = vmatpush1.xpose.msra.mxu0 0.0
    %601 = vmatprep.subr.mxu0 0.0
    %602 = vmatpush1.xpose.msra.mxu0 0.0
    %603 = vmatprep.subr.mxu0 0.0
    %604 = vmatpush1.xpose.msra.mxu0 0.0
    %605 = vmatprep.subr.mxu0 0.0
    %606 = vmatpush1.xpose.msra.mxu0 0.0
    %607 = vmatprep.subr.mxu0 0.0
    %608 = vmatpush1.xpose.msra.mxu0 0.0
    %609 = vmatprep.subr.mxu0 0.0
    %610 = vmatpush1.xpose.msra.mxu0 0.0
    %611 = vmatprep.subr.mxu0 0.0
    %612 = vmatpush1.xpose.msra.mxu0 0.0
    %613 = vmatprep.subr.mxu0 0.0
    %614 = vmatpush1.xpose.msra.mxu0 0.0
    %615 = vmatprep.subr.mxu0 0.0
    %616 = vmatpush1.xpose.msra.mxu0 0.0
    %617 = vmatprep.subr.mxu0 0.0
    %618 = vmatpush1.xpose.msra.mxu0 0.0
    %619 = vmatprep.subr.mxu0 0.0
    %620 = vmatpush1.xpose.msra.mxu0 0.0
    %621 = vmatprep.subr.mxu0 0.0
    %622 = vmatpush1.xpose.msra.mxu0 0.0
    %623 = vmatprep.subr.mxu0 0.0
    %624 = vmatpush1.xpose.msra.mxu0 0.0
    %625 = vmatprep.subr.mxu0 0.0
    %626 = vmatpush1.xpose.msra.mxu0 0.0
    %627 = vmatprep.subr.mxu0 0.0
    %628 = vmatpush1.xpose.msra.mxu0 0.0
    %629 = vmatprep.subr.mxu0 0.0
    %630 = vmatpush1.xpose.msra.mxu0 0.0
    %631 = vmatprep.subr.mxu0 0.0
    %632 = vmatpush1.xpose.msra.mxu0 0.0
    %633 = vmatprep.subr.mxu0 0.0
    %634 = vmatpush1.xpose.msra.mxu0 0.0
    %635 = vmatprep.subr.mxu0 0.0
    %636 = vmatpush1.xpose.msra.mxu0 0.0
    %637 = vmatprep.subr.mxu0 0.0
    %638 = vmatpush1.xpose.msra.mxu0 0.0
    %639 = vmatprep.subr.mxu0 0.0
    %640 = vmatpush1.xpose.msra.mxu0 0.0
    %641 = vmatprep.subr.mxu0 0.0
    %642 = vmatpush1.xpose.msra.mxu0 0.0
    %643 = vmatprep.subr.mxu0 0.0
    %644 = vmatpush1.xpose.msra.mxu0 0.0
    %645 = vmatprep.subr.mxu0 0.0
    %646 = vmatpush1.xpose.msra.mxu0 0.0
    %647 = vmatprep.subr.mxu0 0.0
    %648 = vmatpush1.xpose.msra.mxu0 0.0
    %649 = vmatprep.subr.mxu0 0.0
    %650 = vmatpush1.xpose.msra.mxu0 0.0
    %651 = vmatprep.subr.mxu0 0.0
    %652 = vmatpush1.xpose.msra.mxu0 0.0
    %653 = vmatprep.mubr.f32.mxu0 0.0
    %654 = vmatmul.mubr.f32.gmra.mrb[0].mxu0 %v585
    %v655 = vpop.f32.mrb[0].mxu0
    %v656 = vadd.f32 0.0, %v655
    %v657 = vpop.f32.mrb[0].mxu0
    %658 = vdwg.mxu0
    %659 = vrot.lane.b32.xlu0 %v242, 120
    %v660 = vpop.permute.xlu0 %659
    %661 = vrot.lane.b32.xlu0 %v242, 88
    %v662 = vpop.permute.xlu0 %661
    %v663 = vsel %vm251, %v660, 0
    %v665 = vsel %vm251, %v662, 0
    %667 = vmatprep.subr.mxu0 0.0
    %668 = vmatpush1.xpose.msra.mxu0 %v665
    %669 = vmatprep.subr.mxu0 0.0
    %670 = vmatpush1.xpose.msra.mxu0 0.0
    %671 = vmatprep.subr.mxu0 0.0
    %672 = vmatpush1.xpose.msra.mxu0 0.0
    %673 = vmatprep.subr.mxu0 0.0
    %674 = vmatpush1.xpose.msra.mxu0 0.0
    %675 = vmatprep.subr.mxu0 0.0
    %676 = vmatpush1.xpose.msra.mxu0 0.0
    %677 = vmatprep.subr.mxu0 0.0
    %678 = vmatpush1.xpose.msra.mxu0 0.0
    %679 = vmatprep.subr.mxu0 0.0
    %680 = vmatpush1.xpose.msra.mxu0 0.0
    %681 = vmatprep.subr.mxu0 0.0
    %682 = vmatpush1.xpose.msra.mxu0 0.0
    %683 = vmatprep.subr.mxu0 0.0
    %684 = vmatpush1.xpose.msra.mxu0 0.0
    %685 = vmatprep.subr.mxu0 0.0
    %686 = vmatpush1.xpose.msra.mxu0 0.0
    %687 = vmatprep.subr.mxu0 0.0
    %688 = vmatpush1.xpose.msra.mxu0 0.0
    %689 = vmatprep.subr.mxu0 0.0
    %690 = vmatpush1.xpose.msra.mxu0 0.0
    %691 = vmatprep.subr.mxu0 0.0
    %692 = vmatpush1.xpose.msra.mxu0 0.0
    %693 = vmatprep.subr.mxu0 0.0
    %694 = vmatpush1.xpose.msra.mxu0 0.0
    %695 = vmatprep.subr.mxu0 0.0
    %696 = vmatpush1.xpose.msra.mxu0 0.0
    %697 = vmatprep.subr.mxu0 0.0
    %698 = vmatpush1.xpose.msra.mxu0 0.0
    %699 = vmatprep.subr.mxu0 0.0
    %700 = vmatpush1.xpose.msra.mxu0 0.0
    %701 = vmatprep.subr.mxu0 0.0
    %702 = vmatpush1.xpose.msra.mxu0 0.0
    %703 = vmatprep.subr.mxu0 0.0
    %704 = vmatpush1.xpose.msra.mxu0 0.0
    %705 = vmatprep.subr.mxu0 0.0
    %706 = vmatpush1.xpose.msra.mxu0 0.0
    %707 = vmatprep.subr.mxu0 0.0
    %708 = vmatpush1.xpose.msra.mxu0 0.0
    %709 = vmatprep.subr.mxu0 0.0
    %710 = vmatpush1.xpose.msra.mxu0 0.0
    %711 = vmatprep.subr.mxu0 0.0
    %712 = vmatpush1.xpose.msra.mxu0 0.0
    %713 = vmatprep.subr.mxu0 0.0
    %714 = vmatpush1.xpose.msra.mxu0 0.0
    %715 = vmatprep.subr.mxu0 0.0
    %716 = vmatpush1.xpose.msra.mxu0 0.0
    %717 = vmatprep.subr.mxu0 0.0
    %718 = vmatpush1.xpose.msra.mxu0 0.0
    %719 = vmatprep.subr.mxu0 0.0
    %720 = vmatpush1.xpose.msra.mxu0 0.0
    %721 = vmatprep.subr.mxu0 0.0
    %722 = vmatpush1.xpose.msra.mxu0 0.0
    %723 = vmatprep.subr.mxu0 0.0
    %724 = vmatpush1.xpose.msra.mxu0 0.0
    %725 = vmatprep.subr.mxu0 0.0
    %726 = vmatpush1.xpose.msra.mxu0 0.0
    %727 = vmatprep.subr.mxu0 0.0
    %728 = vmatpush1.xpose.msra.mxu0 0.0
    %729 = vmatprep.subr.mxu0 0.0
    %730 = vmatpush1.xpose.msra.mxu0 0.0
    %731 = vmatprep.mubr.f32.mxu0 0.0
    %732 = vmatmul.mubr.f32.gmra.mrb[0].mxu0 %v663
    %v733 = vpop.f32.mrb[0].mxu0
    %v734 = vadd.f32 0.0, %v733
    %v735 = vpop.f32.mrb[0].mxu0
    %736 = vdwg.mxu0
    %v737 = vsel %vm404, %v656, -inf
    %v738 = vsel %vm404, %v734, -inf
    %v739 = vsel %vm251, %v737, -inf
    %740 = vmax.xlane.f32.xlu0 %v739
    %v741 = vpop.xlane.xlu0 %740
    %v742 = vsel %vm251, %v738, -inf
    %743 = vmax.xlane.f32.xlu0 %v742
    %v744 = vpop.xlane.xlu0 %743
    %v745 = vsub.f32 %v737, %v741
    %v746 = vsub.f32 %v738, %v744
    %v747 = vmul.f32 %v745, 1.442695
    %v748 = vpow.pop %v747
    %v749 = vmul.f32 %v746, 1.442695
    %v750 = vpow.pop %v749
    %v751 = vsel %vm251, %v748, 0.0
    %752 = vadd.xlane.f32.xlu0 %v751
    %v753 = vpop.xlane.xlu0 %752
    %v754 = vsel %vm251, %v750, 0.0
    %755 = vadd.xlane.f32.xlu0 %v754
    %v756 = vpop.xlane.xlu0 %755
    %757 = vrot.lane.b32.xlu0 %v237, 56
    %v758 = vpop.permute.xlu0 %757
    %v761 = vsel %vm251, %v748, 0
    %763 = vmatprep.subr.mxu0 0.0
    %764 = vmatpush1.msra.mxu0 %v758
    %765 = vmatprep.subr.mxu0 0.0
    %766 = vmatpush1.msra.mxu0 0.0
    %767 = vmatprep.subr.mxu0 0.0
    %768 = vmatpush1.msra.mxu0 0.0
    %769 = vmatprep.subr.mxu0 0.0
    %770 = vmatpush1.msra.mxu0 0.0
    %771 = vmatprep.subr.mxu0 0.0
    %772 = vmatpush1.msra.mxu0 0.0
    %773 = vmatprep.subr.mxu0 0.0
    %774 = vmatpush1.msra.mxu0 0.0
    %775 = vmatprep.subr.mxu0 0.0
    %776 = vmatpush1.msra.mxu0 0.0
    %777 = vmatprep.subr.mxu0 0.0
    %778 = vmatpush1.msra.mxu0 0.0
    %779 = vmatprep.subr.mxu0 0.0
    %780 = vmatpush1.msra.mxu0 0.0
    %781 = vmatprep.subr.mxu0 0.0
    %782 = vmatpush1.msra.mxu0 0.0
    %783 = vmatprep.subr.mxu0 0.0
    %784 = vmatpush1.msra.mxu0 0.0
    %785 = vmatprep.subr.mxu0 0.0
    %786 = vmatpush1.msra.mxu0 0.0
    %787 = vmatprep.subr.mxu0 0.0
    %788 = vmatpush1.msra.mxu0 0.0
    %789 = vmatprep.subr.mxu0 0.0
    %790 = vmatpush1.msra.mxu0 0.0
    %791 = vmatprep.subr.mxu0 0.0
    %792 = vmatpush1.msra.mxu0 0.0
    %793 = vmatprep.subr.mxu0 0.0
    %794 = vmatpush1.msra.mxu0 0.0
    %795 = vmatprep.subr.mxu0 0.0
    %796 = vmatpush1.msra.mxu0 0.0
    %797 = vmatprep.subr.mxu0 0.0
    %798 = vmatpush1.msra.mxu0 0.0
    %799 = vmatprep.subr.mxu0 0.0
    %800 = vmatpush1.msra.mxu0 0.0
    %801 = vmatprep.subr.mxu0 0.0
    %802 = vmatpush1.msra.mxu0 0.0
    %803 = vmatprep.subr.mxu0 0.0
    %804 = vmatpush1.msra.mxu0 0.0
    %805 = vmatprep.subr.mxu0 0.0
    %806 = vmatpush1.msra.mxu0 0.0
    %807 = vmatprep.subr.mxu0 0.0
    %808 = vmatpush1.msra.mxu0 0.0
    %809 = vmatprep.subr.mxu0 0.0
    %810 = vmatpush1.msra.mxu0 0.0
    %811 = vmatprep.subr.mxu0 0.0
    %812 = vmatpush1.msra.mxu0 0.0
    %813 = vmatprep.subr.mxu0 0.0
    %814 = vmatpush1.msra.mxu0 0.0
    %815 = vmatprep.subr.mxu0 0.0
    %816 = vmatpush1.msra.mxu0 0.0
    %817 = vmatprep.subr.mxu0 0.0
    %818 = vmatpush1.msra.mxu0 0.0
    %819 = vmatprep.subr.mxu0 0.0
    %820 = vmatpush1.msra.mxu0 0.0
    %821 = vmatprep.subr.mxu0 0.0
    %822 = vmatpush1.msra.mxu0 0.0
    %823 = vmatprep.subr.mxu0 0.0
    %824 = vmatpush1.msra.mxu0 0.0
    %825 = vmatprep.subr.mxu0 0.0
    %826 = vmatpush1.msra.mxu0 0.0
    %827 = vmatprep.mubr.f32.mxu0 0.0
    %828 = vmatmul.mubr.f32.gmra.mrb[0].mxu0 %v761
    %v829 = vpop.f32.mrb[0].mxu0
    %v830 = vadd.f32 0.0, %v829
    %v831 = vpop.f32.mrb[0].mxu0
    %832 = vdwg.mxu0
    %833 = vrot.lane.b32.xlu0 %v242, 56
    %v834 = vpop.permute.xlu0 %833
    %v837 = vsel %vm251, %v750, 0
    %839 = vmatprep.subr.mxu0 0.0
    %840 = vmatpush1.msra.mxu0 %v834
    %841 = vmatprep.subr.mxu0 0.0
    %842 = vmatpush1.msra.mxu0 0.0
    %843 = vmatprep.subr.mxu0 0.0
    %844 = vmatpush1.msra.mxu0 0.0
    %845 = vmatprep.subr.mxu0 0.0
    %846 = vmatpush1.msra.mxu0 0.0
    %847 = vmatprep.subr.mxu0 0.0
    %848 = vmatpush1.msra.mxu0 0.0
    %849 = vmatprep.subr.mxu0 0.0
    %850 = vmatpush1.msra.mxu0 0.0
    %851 = vmatprep.subr.mxu0 0.0
    %852 = vmatpush1.msra.mxu0 0.0
    %853 = vmatprep.subr.mxu0 0.0
    %854 = vmatpush1.msra.mxu0 0.0
    %855 = vmatprep.subr.mxu0 0.0
    %856 = vmatpush1.msra.mxu0 0.0
    %857 = vmatprep.subr.mxu0 0.0
    %858 = vmatpush1.msra.mxu0 0.0
    %859 = vmatprep.subr.mxu0 0.0
    %860 = vmatpush1.msra.mxu0 0.0
    %861 = vmatprep.subr.mxu0 0.0
    %862 = vmatpush1.msra.mxu0 0.0
    %863 = vmatprep.subr.mxu0 0.0
    %864 = vmatpush1.msra.mxu0 0.0
    %865 = vmatprep.subr.mxu0 0.0
    %866 = vmatpush1.msra.mxu0 0.0
    %867 = vmatprep.subr.mxu0 0.0
    %868 = vmatpush1.msra.mxu0 0.0
    %869 = vmatprep.subr.mxu0 0.0
    %870 = vmatpush1.msra.mxu0 0.0
    %871 = vmatprep.subr.mxu0 0.0
    %872 = vmatpush1.msra.mxu0 0.0
    %873 = vmatprep.subr.mxu0 0.0
    %874 = vmatpush1.msra.mxu0 0.0
    %875 = vmatprep.subr.mxu0 0.0
    %876 = vmatpush1.msra.mxu0 0.0
    %877 = vmatprep.subr.mxu0 0.0
    %878 = vmatpush1.msra.mxu0 0.0
    %879 = vmatprep.subr.mxu0 0.0
    %880 = vmatpush1.msra.mxu0 0.0
    %881 = vmatprep.subr.mxu0 0.0
    %882 = vmatpush1.msra.mxu0 0.0
    %883 = vmatprep.subr.mxu0 0.0
    %884 = vmatpush1.msra.mxu0 0.0
    %885 = vmatprep.subr.mxu0 0.0
    %886 = vmatpush1.msra.mxu0 0.0
    %887 = vmatprep.subr.mxu0 0.0
    %888 = vmatpush1.msra.mxu0 0.0
    %889 = vmatprep.subr.mxu0 0.0
    %890 = vmatpush1.msra.mxu0 0.0
    %891 = vmatprep.subr.mxu0 0.0
    %892 = vmatpush1.msra.mxu0 0.0
    %893 = vmatprep.subr.mxu0 0.0
    %894 = vmatpush1.msra.mxu0 0.0
    %895 = vmatprep.subr.mxu0 0.0
    %896 = vmatpush1.msra.mxu0 0.0
    %897 = vmatprep.subr.mxu0 0.0
    %898 = vmatpush1.msra.mxu0 0.0
    %899 = vmatprep.subr.mxu0 0.0
    %900 = vmatpush1.msra.mxu0 0.0
    %901 = vmatprep.subr.mxu0 0.0
    %902 = vmatpush1.msra.mxu0 0.0
    %903 = vmatprep.mubr.f32.mxu0 0.0
    %904 = vmatmul.mubr.f32.gmra.mrb[0].mxu0 %v837
    %v905 = vpop.f32.mrb[0].mxu0
    %v906 = vadd.f32 0.0, %v905
    %v907 = vpop.f32.mrb[0].mxu0
    %908 = vdwg.mxu0
    %v909 = vrcp.pop %v753
    %v910 = vrcp.pop %v756
    %v911 = vmul.f32 %v830, %v909
    %v912 = vmul.f32 %v906, %v910
    %913 = vrot.lane.b32.xlu0 %v237, 112
    %v914 = vpop.permute.xlu0 %913
    %915 = vrot.lane.b32.xlu0 %v237, 80
    %v916 = vpop.permute.xlu0 %915
    %v917 = vsel %vm251, %v914, 0
    %v919 = vsel %vm251, %v916, 0
    %921 = vmatprep.subr.mxu0 0.0
    %922 = vmatpush1.xpose.msra.mxu0 %v919
    %923 = vmatprep.subr.mxu0 0.0
    %924 = vmatpush1.xpose.msra.mxu0 0.0
    %925 = vmatprep.subr.mxu0 0.0
    %926 = vmatpush1.xpose.msra.mxu0 0.0
    %927 = vmatprep.subr.mxu0 0.0
    %928 = vmatpush1.xpose.msra.mxu0 0.0
    %929 = vmatprep.subr.mxu0 0.0
    %930 = vmatpush1.xpose.msra.mxu0 0.0
    %931 = vmatprep.subr.mxu0 0.0
    %932 = vmatpush1.xpose.msra.mxu0 0.0
    %933 = vmatprep.subr.mxu0 0.0
    %934 = vmatpush1.xpose.msra.mxu0 0.0
    %935 = vmatprep.subr.mxu0 0.0
    %936 = vmatpush1.xpose.msra.mxu0 0.0
    %937 = vmatprep.subr.mxu0 0.0
    %938 = vmatpush1.xpose.msra.mxu0 0.0
    %939 = vmatprep.subr.mxu0 0.0
    %940 = vmatpush1.xpose.msra.mxu0 0.0
    %941 = vmatprep.subr.mxu0 0.0
    %942 = vmatpush1.xpose.msra.mxu0 0.0
    %943 = vmatprep.subr.mxu0 0.0
    %944 = vmatpush1.xpose.msra.mxu0 0.0
    %945 = vmatprep.subr.mxu0 0.0
    %946 = vmatpush1.xpose.msra.mxu0 0.0
    %947 = vmatprep.subr.mxu0 0.0
    %948 = vmatpush1.xpose.msra.mxu0 0.0
    %949 = vmatprep.subr.mxu0 0.0
    %950 = vmatpush1.xpose.msra.mxu0 0.0
    %951 = vmatprep.subr.mxu0 0.0
    %952 = vmatpush1.xpose.msra.mxu0 0.0
    %953 = vmatprep.subr.mxu0 0.0
    %954 = vmatpush1.xpose.msra.mxu0 0.0
    %955 = vmatprep.subr.mxu0 0.0
    %956 = vmatpush1.xpose.msra.mxu0 0.0
    %957 = vmatprep.subr.mxu0 0.0
    %958 = vmatpush1.xpose.msra.mxu0 0.0
    %959 = vmatprep.subr.mxu0 0.0
    %960 = vmatpush1.xpose.msra.mxu0 0.0
    %961 = vmatprep.subr.mxu0 0.0
    %962 = vmatpush1.xpose.msra.mxu0 0.0
    %963 = vmatprep.subr.mxu0 0.0
    %964 = vmatpush1.xpose.msra.mxu0 0.0
    %965 = vmatprep.subr.mxu0 0.0
    %966 = vmatpush1.xpose.msra.mxu0 0.0
    %967 = vmatprep.subr.mxu0 0.0
    %968 = vmatpush1.xpose.msra.mxu0 0.0
    %969 = vmatprep.subr.mxu0 0.0
    %970 = vmatpush1.xpose.msra.mxu0 0.0
    %971 = vmatprep.subr.mxu0 0.0
    %972 = vmatpush1.xpose.msra.mxu0 0.0
    %973 = vmatprep.subr.mxu0 0.0
    %974 = vmatpush1.xpose.msra.mxu0 0.0
    %975 = vmatprep.subr.mxu0 0.0
    %976 = vmatpush1.xpose.msra.mxu0 0.0
    %977 = vmatprep.subr.mxu0 0.0
    %978 = vmatpush1.xpose.msra.mxu0 0.0
    %979 = vmatprep.subr.mxu0 0.0
    %980 = vmatpush1.xpose.msra.mxu0 0.0
    %981 = vmatprep.subr.mxu0 0.0
    %982 = vmatpush1.xpose.msra.mxu0 0.0
    %983 = vmatprep.subr.mxu0 0.0
    %984 = vmatpush1.xpose.msra.mxu0 0.0
    %985 = vmatprep.mubr.f32.mxu0 0.0
    %986 = vmatmul.mubr.f32.gmra.mrb[0].mxu0 %v917
    %v987 = vpop.f32.mrb[0].mxu0
    %v988 = vadd.f32 0.0, %v987
    %v989 = vpop.f32.mrb[0].mxu0
    %990 = vdwg.mxu0
    %991 = vrot.lane.b32.xlu0 %v242, 112
    %v992 = vpop.permute.xlu0 %991
    %993 = vrot.lane.b32.xlu0 %v242, 80
    %v994 = vpop.permute.xlu0 %993
    %v995 = vsel %vm251, %v992, 0
    %v997 = vsel %vm251, %v994, 0
    %999 = vmatprep.subr.mxu0 0.0
    %1000 = vmatpush1.xpose.msra.mxu0 %v997
    %1001 = vmatprep.subr.mxu0 0.0
    %1002 = vmatpush1.xpose.msra.mxu0 0.0
    %1003 = vmatprep.subr.mxu0 0.0
    %1004 = vmatpush1.xpose.msra.mxu0 0.0
    %1005 = vmatprep.subr.mxu0 0.0
    %1006 = vmatpush1.xpose.msra.mxu0 0.0
    %1007 = vmatprep.subr.mxu0 0.0
    %1008 = vmatpush1.xpose.msra.mxu0 0.0
    %1009 = vmatprep.subr.mxu0 0.0
    %1010 = vmatpush1.xpose.msra.mxu0 0.0
    %1011 = vmatprep.subr.mxu0 0.0
    %1012 = vmatpush1.xpose.msra.mxu0 0.0
    %1013 = vmatprep.subr.mxu0 0.0
    %1014 = vmatpush1.xpose.msra.mxu0 0.0
    %1015 = vmatprep.subr.mxu0 0.0
    %1016 = vmatpush1.xpose.msra.mxu0 0.0
    %1017 = vmatprep.subr.mxu0 0.0
    %1018 = vmatpush1.xpose.msra.mxu0 0.0
    %1019 = vmatprep.subr.mxu0 0.0
    %1020 = vmatpush1.xpose.msra.mxu0 0.0
    %1021 = vmatprep.subr.mxu0 0.0
    %1022 = vmatpush1.xpose.msra.mxu0 0.0
    %1023 = vmatprep.subr.mxu0 0.0
    %1024 = vmatpush1.xpose.msra.mxu0 0.0
    %1025 = vmatprep.subr.mxu0 0.0
    %1026 = vmatpush1.xpose.msra.mxu0 0.0
    %1027 = vmatprep.subr.mxu0 0.0
    %1028 = vmatpush1.xpose.msra.mxu0 0.0
    %1029 = vmatprep.subr.mxu0 0.0
    %1030 = vmatpush1.xpose.msra.mxu0 0.0
    %1031 = vmatprep.subr.mxu0 0.0
    %1032 = vmatpush1.xpose.msra.mxu0 0.0
    %1033 = vmatprep.subr.mxu0 0.0
    %1034 = vmatpush1.xpose.msra.mxu0 0.0
    %1035 = vmatprep.subr.mxu0 0.0
    %1036 = vmatpush1.xpose.msra.mxu0 0.0
    %1037 = vmatprep.subr.mxu0 0.0
    %1038 = vmatpush1.xpose.msra.mxu0 0.0
    %1039 = vmatprep.subr.mxu0 0.0
    %1040 = vmatpush1.xpose.msra.mxu0 0.0
    %1041 = vmatprep.subr.mxu0 0.0
    %1042 = vmatpush1.xpose.msra.mxu0 0.0
    %1043 = vmatprep.subr.mxu0 0.0
    %1044 = vmatpush1.xpose.msra.mxu0 0.0
    %1045 = vmatprep.subr.mxu0 0.0
    %1046 = vmatpush1.xpose.msra.mxu0 0.0
    %1047 = vmatprep.subr.mxu0 0.0
    %1048 = vmatpush1.xpose.msra.mxu0 0.0
    %1049 = vmatprep.subr.mxu0 0.0
    %1050 = vmatpush1.xpose.msra.mxu0 0.0
    %1051 = vmatprep.subr.mxu0 0.0
    %1052 = vmatpush1.xpose.msra.mxu0 0.0
    %1053 = vmatprep.subr.mxu0 0.0
    %1054 = vmatpush1.xpose.msra.mxu0 0.0
    %1055 = vmatprep.subr.mxu0 0.0
    %1056 = vmatpush1.xpose.msra.mxu0 0.0
    %1057 = vmatprep.subr.mxu0 0.0
    %1058 = vmatpush1.xpose.msra.mxu0 0.0
    %1059 = vmatprep.subr.mxu0 0.0
    %1060 = vmatpush1.xpose.msra.mxu0 0.0
    %1061 = vmatprep.subr.mxu0 0.0
    %1062 = vmatpush1.xpose.msra.mxu0 0.0
    %1063 = vmatprep.mubr.f32.mxu0 0.0
    %1064 = vmatmul.mubr.f32.gmra.mrb[0].mxu0 %v995
    %v1065 = vpop.f32.mrb[0].mxu0
    %v1066 = vadd.f32 0.0, %v1065
    %v1067 = vpop.f32.mrb[0].mxu0
    %1068 = vdwg.mxu0
    %v1069 = vsel %vm404, %v988, -inf
    %v1070 = vsel %vm404, %v1066, -inf
    %v1071 = vsel %vm251, %v1069, -inf
    %1072 = vmax.xlane.f32.xlu0 %v1071
    %v1073 = vpop.xlane.xlu0 %1072
    %v1074 = vsel %vm251, %v1070, -inf
    %1075 = vmax.xlane.f32.xlu0 %v1074
    %v1076 = vpop.xlane.xlu0 %1075
    %v1077 = vsub.f32 %v1069, %v1073
    %v1078 = vsub.f32 %v1070, %v1076
    %v1079 = vmul.f32 %v1077, 1.442695
    %v1080 = vpow.pop %v1079
    %v1081 = vmul.f32 %v1078, 1.442695
    %v1082 = vpow.pop %v1081
    %v1083 = vsel %vm251, %v1080, 0.0
    %1084 = vadd.xlane.f32.xlu0 %v1083
    %v1085 = vpop.xlane.xlu0 %1084
    %v1086 = vsel %vm251, %v1082, 0.0
    %1087 = vadd.xlane.f32.xlu0 %v1086
    %v1088 = vpop.xlane.xlu0 %1087
    %1089 = vrot.lane.b32.xlu0 %v237, 48
    %v1090 = vpop.permute.xlu0 %1089
    %v1093 = vsel %vm251, %v1080, 0
    %1095 = vmatprep.subr.mxu0 0.0
    %1096 = vmatpush1.msra.mxu0 %v1090
    %1097 = vmatprep.subr.mxu0 0.0
    %1098 = vmatpush1.msra.mxu0 0.0
    %1099 = vmatprep.subr.mxu0 0.0
    %1100 = vmatpush1.msra.mxu0 0.0
    %1101 = vmatprep.subr.mxu0 0.0
    %1102 = vmatpush1.msra.mxu0 0.0
    %1103 = vmatprep.subr.mxu0 0.0
    %1104 = vmatpush1.msra.mxu0 0.0
    %1105 = vmatprep.subr.mxu0 0.0
    %1106 = vmatpush1.msra.mxu0 0.0
    %1107 = vmatprep.subr.mxu0 0.0
    %1108 = vmatpush1.msra.mxu0 0.0
    %1109 = vmatprep.subr.mxu0 0.0
    %1110 = vmatpush1.msra.mxu0 0.0
    %1111 = vmatprep.subr.mxu0 0.0
    %1112 = vmatpush1.msra.mxu0 0.0
    %1113 = vmatprep.subr.mxu0 0.0
    %1114 = vmatpush1.msra.mxu0 0.0
    %1115 = vmatprep.subr.mxu0 0.0
    %1116 = vmatpush1.msra.mxu0 0.0
    %1117 = vmatprep.subr.mxu0 0.0
    %1118 = vmatpush1.msra.mxu0 0.0
    %1119 = vmatprep.subr.mxu0 0.0
    %1120 = vmatpush1.msra.mxu0 0.0
    %1121 = vmatprep.subr.mxu0 0.0
    %1122 = vmatpush1.msra.mxu0 0.0
    %1123 = vmatprep.subr.mxu0 0.0
    %1124 = vmatpush1.msra.mxu0 0.0
    %1125 = vmatprep.subr.mxu0 0.0
    %1126 = vmatpush1.msra.mxu0 0.0
    %1127 = vmatprep.subr.mxu0 0.0
    %1128 = vmatpush1.msra.mxu0 0.0
    %1129 = vmatprep.subr.mxu0 0.0
    %1130 = vmatpush1.msra.mxu0 0.0
    %1131 = vmatprep.subr.mxu0 0.0
    %1132 = vmatpush1.msra.mxu0 0.0
    %1133 = vmatprep.subr.mxu0 0.0
    %1134 = vmatpush1.msra.mxu0 0.0
    %1135 = vmatprep.subr.mxu0 0.0
    %1136 = vmatpush1.msra.mxu0 0.0
    %1137 = vmatprep.subr.mxu0 0.0
    %1138 = vmatpush1.msra.mxu0 0.0
    %1139 = vmatprep.subr.mxu0 0.0
    %1140 = vmatpush1.msra.mxu0 0.0
    %1141 = vmatprep.subr.mxu0 0.0
    %1142 = vmatpush1.msra.mxu0 0.0
    %1143 = vmatprep.subr.mxu0 0.0
    %1144 = vmatpush1.msra.mxu0 0.0
    %1145 = vmatprep.subr.mxu0 0.0
    %1146 = vmatpush1.msra.mxu0 0.0
    %1147 = vmatprep.subr.mxu0 0.0
    %1148 = vmatpush1.msra.mxu0 0.0
    %1149 = vmatprep.subr.mxu0 0.0
    %1150 = vmatpush1.msra.mxu0 0.0
    %1151 = vmatprep.subr.mxu0 0.0
    %1152 = vmatpush1.msra.mxu0 0.0
    %1153 = vmatprep.subr.mxu0 0.0
    %1154 = vmatpush1.msra.mxu0 0.0
    %1155 = vmatprep.subr.mxu0 0.0
    %1156 = vmatpush1.msra.mxu0 0.0
    %1157 = vmatprep.subr.mxu0 0.0
    %1158 = vmatpush1.msra.mxu0 0.0
    %1159 = vmatprep.mubr.f32.mxu0 0.0
    %1160 = vmatmul.mubr.f32.gmra.mrb[0].mxu0 %v1093
    %v1161 = vpop.f32.mrb[0].mxu0
    %v1162 = vadd.f32 0.0, %v1161
    %v1163 = vpop.f32.mrb[0].mxu0
    %1164 = vdwg.mxu0
    %1165 = vrot.lane.b32.xlu0 %v242, 48
    %v1166 = vpop.permute.xlu0 %1165
    %v1169 = vsel %vm251, %v1082, 0
    %1171 = vmatprep.subr.mxu0 0.0
    %1172 = vmatpush1.msra.mxu0 %v1166
    %1173 = vmatprep.subr.mxu0 0.0
    %1174 = vmatpush1.msra.mxu0 0.0
    %1175 = vmatprep.subr.mxu0 0.0
    %1176 = vmatpush1.msra.mxu0 0.0
    %1177 = vmatprep.subr.mxu0 0.0
    %1178 = vmatpush1.msra.mxu0 0.0
    %1179 = vmatprep.subr.mxu0 0.0
    %1180 = vmatpush1.msra.mxu0 0.0
    %1181 = vmatprep.subr.mxu0 0.0
    %1182 = vmatpush1.msra.mxu0 0.0
    %1183 = vmatprep.subr.mxu0 0.0
    %1184 = vmatpush1.msra.mxu0 0.0
    %1185 = vmatprep.subr.mxu0 0.0
    %1186 = vmatpush1.msra.mxu0 0.0
    %1187 = vmatprep.subr.mxu0 0.0
    %1188 = vmatpush1.msra.mxu0 0.0
    %1189 = vmatprep.subr.mxu0 0.0
    %1190 = vmatpush1.msra.mxu0 0.0
    %1191 = vmatprep.subr.mxu0 0.0
    %1192 = vmatpush1.msra.mxu0 0.0
    %1193 = vmatprep.subr.mxu0 0.0
    %1194 = vmatpush1.msra.mxu0 0.0
    %1195 = vmatprep.subr.mxu0 0.0
    %1196 = vmatpush1.msra.mxu0 0.0
    %1197 = vmatprep.subr.mxu0 0.0
    %1198 = vmatpush1.msra.mxu0 0.0
    %1199 = vmatprep.subr.mxu0 0.0
    %1200 = vmatpush1.msra.mxu0 0.0
    %1201 = vmatprep.subr.mxu0 0.0
    %1202 = vmatpush1.msra.mxu0 0.0
    %1203 = vmatprep.subr.mxu0 0.0
    %1204 = vmatpush1.msra.mxu0 0.0
    %1205 = vmatprep.subr.mxu0 0.0
    %1206 = vmatpush1.msra.mxu0 0.0
    %1207 = vmatprep.subr.mxu0 0.0
    %1208 = vmatpush1.msra.mxu0 0.0
    %1209 = vmatprep.subr.mxu0 0.0
    %1210 = vmatpush1.msra.mxu0 0.0
    %1211 = vmatprep.subr.mxu0 0.0
    %1212 = vmatpush1.msra.mxu0 0.0
    %1213 = vmatprep.subr.mxu0 0.0
    %1214 = vmatpush1.msra.mxu0 0.0
    %1215 = vmatprep.subr.mxu0 0.0
    %1216 = vmatpush1.msra.mxu0 0.0
    %1217 = vmatprep.subr.mxu0 0.0
    %1218 = vmatpush1.msra.mxu0 0.0
    %1219 = vmatprep.subr.mxu0 0.0
    %1220 = vmatpush1.msra.mxu0 0.0
    %1221 = vmatprep.subr.mxu0 0.0
    %1222 = vmatpush1.msra.mxu0 0.0
    %1223 = vmatprep.subr.mxu0 0.0
    %1224 = vmatpush1.msra.mxu0 0.0
    %1225 = vmatprep.subr.mxu0 0.0
    %1226 = vmatpush1.msra.mxu0 0.0
    %1227 = vmatprep.subr.mxu0 0.0
    %1228 = vmatpush1.msra.mxu0 0.0
    %1229 = vmatprep.subr.mxu0 0.0
    %1230 = vmatpush1.msra.mxu0 0.0
    %1231 = vmatprep.subr.mxu0 0.0
    %1232 = vmatpush1.msra.mxu0 0.0
    %1233 = vmatprep.subr.mxu0 0.0
    %1234 = vmatpush1.msra.mxu0 0.0
    %1235 = vmatprep.mubr.f32.mxu0 0.0
    %1236 = vmatmul.mubr.f32.gmra.mrb[0].mxu0 %v1169
    %v1237 = vpop.f32.mrb[0].mxu0
    %v1238 = vadd.f32 0.0, %v1237
    %v1239 = vpop.f32.mrb[0].mxu0
    %1240 = vdwg.mxu0
    %v1241 = vrcp.pop %v1085
    %v1242 = vrcp.pop %v1088
    %v1243 = vmul.f32 %v1162, %v1241
    %v1244 = vmul.f32 %v1238, %v1242
    %1245 = vrot.lane.b32.xlu0 %v237, 104
    %v1246 = vpop.permute.xlu0 %1245
    %1247 = vrot.lane.b32.xlu0 %v237, 72
    %v1248 = vpop.permute.xlu0 %1247
    %v1249 = vsel %vm251, %v1246, 0
    %v1251 = vsel %vm251, %v1248, 0
    %1253 = vmatprep.subr.mxu0 0.0
    %1254 = vmatpush1.xpose.msra.mxu0 %v1251
    %1255 = vmatprep.subr.mxu0 0.0
    %1256 = vmatpush1.xpose.msra.mxu0 0.0
    %1257 = vmatprep.subr.mxu0 0.0
    %1258 = vmatpush1.xpose.msra.mxu0 0.0
    %1259 = vmatprep.subr.mxu0 0.0
    %1260 = vmatpush1.xpose.msra.mxu0 0.0
    %1261 = vmatprep.subr.mxu0 0.0
    %1262 = vmatpush1.xpose.msra.mxu0 0.0
    %1263 = vmatprep.subr.mxu0 0.0
    %1264 = vmatpush1.xpose.msra.mxu0 0.0
    %1265 = vmatprep.subr.mxu0 0.0
    %1266 = vmatpush1.xpose.msra.mxu0 0.0
    %1267 = vmatprep.subr.mxu0 0.0
    %1268 = vmatpush1.xpose.msra.mxu0 0.0
    %1269 = vmatprep.subr.mxu0 0.0
    %1270 = vmatpush1.xpose.msra.mxu0 0.0
    %1271 = vmatprep.subr.mxu0 0.0
    %1272 = vmatpush1.xpose.msra.mxu0 0.0
    %1273 = vmatprep.subr.mxu0 0.0
    %1274 = vmatpush1.xpose.msra.mxu0 0.0
    %1275 = vmatprep.subr.mxu0 0.0
    %1276 = vmatpush1.xpose.msra.mxu0 0.0
    %1277 = vmatprep.subr.mxu0 0.0
    %1278 = vmatpush1.xpose.msra.mxu0 0.0
    %1279 = vmatprep.subr.mxu0 0.0
    %1280 = vmatpush1.xpose.msra.mxu0 0.0
    %1281 = vmatprep.subr.mxu0 0.0
    %1282 = vmatpush1.xpose.msra.mxu0 0.0
    %1283 = vmatprep.subr.mxu0 0.0
    %1284 = vmatpush1.xpose.msra.mxu0 0.0
    %1285 = vmatprep.subr.mxu0 0.0
    %1286 = vmatpush1.xpose.msra.mxu0 0.0
    %1287 = vmatprep.subr.mxu0 0.0
    %1288 = vmatpush1.xpose.msra.mxu0 0.0
    %1289 = vmatprep.subr.mxu0 0.0
    %1290 = vmatpush1.xpose.msra.mxu0 0.0
    %1291 = vmatprep.subr.mxu0 0.0
    %1292 = vmatpush1.xpose.msra.mxu0 0.0
    %1293 = vmatprep.subr.mxu0 0.0
    %1294 = vmatpush1.xpose.msra.mxu0 0.0
    %1295 = vmatprep.subr.mxu0 0.0
    %1296 = vmatpush1.xpose.msra.mxu0 0.0
    %1297 = vmatprep.subr.mxu0 0.0
    %1298 = vmatpush1.xpose.msra.mxu0 0.0
    %1299 = vmatprep.subr.mxu0 0.0
    %1300 = vmatpush1.xpose.msra.mxu0 0.0
    %1301 = vmatprep.subr.mxu0 0.0
    %1302 = vmatpush1.xpose.msra.mxu0 0.0
    %1303 = vmatprep.subr.mxu0 0.0
    %1304 = vmatpush1.xpose.msra.mxu0 0.0
    %1305 = vmatprep.subr.mxu0 0.0
    %1306 = vmatpush1.xpose.msra.mxu0 0.0
    %1307 = vmatprep.subr.mxu0 0.0
    %1308 = vmatpush1.xpose.msra.mxu0 0.0
    %1309 = vmatprep.subr.mxu0 0.0
    %1310 = vmatpush1.xpose.msra.mxu0 0.0
    %1311 = vmatprep.subr.mxu0 0.0
    %1312 = vmatpush1.xpose.msra.mxu0 0.0
    %1313 = vmatprep.subr.mxu0 0.0
    %1314 = vmatpush1.xpose.msra.mxu0 0.0
    %1315 = vmatprep.subr.mxu0 0.0
    %1316 = vmatpush1.xpose.msra.mxu0 0.0
    %1317 = vmatprep.mubr.f32.mxu0 0.0
    %1318 = vmatmul.mubr.f32.gmra.mrb[0].mxu0 %v1249
    %v1319 = vpop.f32.mrb[0].mxu0
    %v1320 = vadd.f32 0.0, %v1319
    %v1321 = vpop.f32.mrb[0].mxu0
    %1322 = vdwg.mxu0
    %1323 = vrot.lane.b32.xlu0 %v242, 104
    %v1324 = vpop.permute.xlu0 %1323
    %1325 = vrot.lane.b32.xlu0 %v242, 72
    %v1326 = vpop.permute.xlu0 %1325
    %v1327 = vsel %vm251, %v1324, 0
    %v1329 = vsel %vm251, %v1326, 0
    %1331 = vmatprep.subr.mxu0 0.0
    %1332 = vmatpush1.xpose.msra.mxu0 %v1329
    %1333 = vmatprep.subr.mxu0 0.0
    %1334 = vmatpush1.xpose.msra.mxu0 0.0
    %1335 = vmatprep.subr.mxu0 0.0
    %1336 = vmatpush1.xpose.msra.mxu0 0.0
    %1337 = vmatprep.subr.mxu0 0.0
    %1338 = vmatpush1.xpose.msra.mxu0 0.0
    %1339 = vmatprep.subr.mxu0 0.0
    %1340 = vmatpush1.xpose.msra.mxu0 0.0
    %1341 = vmatprep.subr.mxu0 0.0
    %1342 = vmatpush1.xpose.msra.mxu0 0.0
    %1343 = vmatprep.subr.mxu0 0.0
    %1344 = vmatpush1.xpose.msra.mxu0 0.0
    %1345 = vmatprep.subr.mxu0 0.0
    %1346 = vmatpush1.xpose.msra.mxu0 0.0
    %1347 = vmatprep.subr.mxu0 0.0
    %1348 = vmatpush1.xpose.msra.mxu0 0.0
    %1349 = vmatprep.subr.mxu0 0.0
    %1350 = vmatpush1.xpose.msra.mxu0 0.0
    %1351 = vmatprep.subr.mxu0 0.0
    %1352 = vmatpush1.xpose.msra.mxu0 0.0
    %1353 = vmatprep.subr.mxu0 0.0
    %1354 = vmatpush1.xpose.msra.mxu0 0.0
    %1355 = vmatprep.subr.mxu0 0.0
    %1356 = vmatpush1.xpose.msra.mxu0 0.0
    %1357 = vmatprep.subr.mxu0 0.0
    %1358 = vmatpush1.xpose.msra.mxu0 0.0
    %1359 = vmatprep.subr.mxu0 0.0
    %1360 = vmatpush1.xpose.msra.mxu0 0.0
    %1361 = vmatprep.subr.mxu0 0.0
    %1362 = vmatpush1.xpose.msra.mxu0 0.0
    %1363 = vmatprep.subr.mxu0 0.0
    %1364 = vmatpush1.xpose.msra.mxu0 0.0
    %1365 = vmatprep.subr.mxu0 0.0
    %1366 = vmatpush1.xpose.msra.mxu0 0.0
    %1367 = vmatprep.subr.mxu0 0.0
    %1368 = vmatpush1.xpose.msra.mxu0 0.0
    %1369 = vmatprep.subr.mxu0 0.0
    %1370 = vmatpush1.xpose.msra.mxu0 0.0
    %1371 = vmatprep.subr.mxu0 0.0
    %1372 = vmatpush1.xpose.msra.mxu0 0.0
    %1373 = vmatprep.subr.mxu0 0.0
    %1374 = vmatpush1.xpose.msra.mxu0 0.0
    %1375 = vmatprep.subr.mxu0 0.0
    %1376 = vmatpush1.xpose.msra.mxu0 0.0
    %1377 = vmatprep.subr.mxu0 0.0
    %1378 = vmatpush1.xpose.msra.mxu0 0.0
    %1379 = vmatprep.subr.mxu0 0.0
    %1380 = vmatpush1.xpose.msra.mxu0 0.0
    %1381 = vmatprep.subr.mxu0 0.0
    %1382 = vmatpush1.xpose.msra.mxu0 0.0
    %1383 = vmatprep.subr.mxu0 0.0
    %1384 = vmatpush1.xpose.msra.mxu0 0.0
    %1385 = vmatprep.subr.mxu0 0.0
    %1386 = vmatpush1.xpose.msra.mxu0 0.0
    %1387 = vmatprep.subr.mxu0 0.0
    %1388 = vmatpush1.xpose.msra.mxu0 0.0
    %1389 = vmatprep.subr.mxu0 0.0
    %1390 = vmatpush1.xpose.msra.mxu0 0.0
    %1391 = vmatprep.subr.mxu0 0.0
    %1392 = vmatpush1.xpose.msra.mxu0 0.0
    %1393 = vmatprep.subr.mxu0 0.0
    %1394 = vmatpush1.xpose.msra.mxu0 0.0
    %1395 = vmatprep.mubr.f32.mxu0 0.0
    %1396 = vmatmul.mubr.f32.gmra.mrb[0].mxu0 %v1327
    %v1397 = vpop.f32.mrb[0].mxu0
    %v1398 = vadd.f32 0.0, %v1397
    %v1399 = vpop.f32.mrb[0].mxu0
    %1400 = vdwg.mxu0
    %v1401 = vsel %vm404, %v1320, -inf
    %v1402 = vsel %vm404, %v1398, -inf
    %v1403 = vsel %vm251, %v1401, -inf
    %1404 = vmax.xlane.f32.xlu0 %v1403
    %v1405 = vpop.xlane.xlu0 %1404
    %v1406 = vsel %vm251, %v1402, -inf
    %1407 = vmax.xlane.f32.xlu0 %v1406
    %v1408 = vpop.xlane.xlu0 %1407
    %v1409 = vsub.f32 %v1401, %v1405
    %v1410 = vsub.f32 %v1402, %v1408
    %v1411 = vmul.f32 %v1409, 1.442695
    %v1412 = vpow.pop %v1411
    %v1413 = vmul.f32 %v1410, 1.442695
    %v1414 = vpow.pop %v1413
    %v1415 = vsel %vm251, %v1412, 0.0
    %1416 = vadd.xlane.f32.xlu0 %v1415
    %v1417 = vpop.xlane.xlu0 %1416
    %v1418 = vsel %vm251, %v1414, 0.0
    %1419 = vadd.xlane.f32.xlu0 %v1418
    %v1420 = vpop.xlane.xlu0 %1419
    %1421 = vrot.lane.b32.xlu0 %v237, 40
    %v1422 = vpop.permute.xlu0 %1421
    %v1425 = vsel %vm251, %v1412, 0
    %1427 = vmatprep.subr.mxu0 0.0
    %1428 = vmatpush1.msra.mxu0 %v1422
    %1429 = vmatprep.subr.mxu0 0.0
    %1430 = vmatpush1.msra.mxu0 0.0
    %1431 = vmatprep.subr.mxu0 0.0
    %1432 = vmatpush1.msra.mxu0 0.0
    %1433 = vmatprep.subr.mxu0 0.0
    %1434 = vmatpush1.msra.mxu0 0.0
    %1435 = vmatprep.subr.mxu0 0.0
    %1436 = vmatpush1.msra.mxu0 0.0
    %1437 = vmatprep.subr.mxu0 0.0
    %1438 = vmatpush1.msra.mxu0 0.0
    %1439 = vmatprep.subr.mxu0 0.0
    %1440 = vmatpush1.msra.mxu0 0.0
    %1441 = vmatprep.subr.mxu0 0.0
    %1442 = vmatpush1.msra.mxu0 0.0
    %1443 = vmatprep.subr.mxu0 0.0
    %1444 = vmatpush1.msra.mxu0 0.0
    %1445 = vmatprep.subr.mxu0 0.0
    %1446 = vmatpush1.msra.mxu0 0.0
    %1447 = vmatprep.subr.mxu0 0.0
    %1448 = vmatpush1.msra.mxu0 0.0
    %1449 = vmatprep.subr.mxu0 0.0
    %1450 = vmatpush1.msra.mxu0 0.0
    %1451 = vmatprep.subr.mxu0 0.0
    %1452 = vmatpush1.msra.mxu0 0.0
    %1453 = vmatprep.subr.mxu0 0.0
    %1454 = vmatpush1.msra.mxu0 0.0
    %1455 = vmatprep.subr.mxu0 0.0
    %1456 = vmatpush1.msra.mxu0 0.0
    %1457 = vmatprep.subr.mxu0 0.0
    %1458 = vmatpush1.msra.mxu0 0.0
    %1459 = vmatprep.subr.mxu0 0.0
    %1460 = vmatpush1.msra.mxu0 0.0
    %1461 = vmatprep.subr.mxu0 0.0
    %1462 = vmatpush1.msra.mxu0 0.0
    %1463 = vmatprep.subr.mxu0 0.0
    %1464 = vmatpush1.msra.mxu0 0.0
    %1465 = vmatprep.subr.mxu0 0.0
    %1466 = vmatpush1.msra.mxu0 0.0
    %1467 = vmatprep.subr.mxu0 0.0
    %1468 = vmatpush1.msra.mxu0 0.0
    %1469 = vmatprep.subr.mxu0 0.0
    %1470 = vmatpush1.msra.mxu0 0.0
    %1471 = vmatprep.subr.mxu0 0.0
    %1472 = vmatpush1.msra.mxu0 0.0
    %1473 = vmatprep.subr.mxu0 0.0
    %1474 = vmatpush1.msra.mxu0 0.0
    %1475 = vmatprep.subr.mxu0 0.0
    %1476 = vmatpush1.msra.mxu0 0.0
    %1477 = vmatprep.subr.mxu0 0.0
    %1478 = vmatpush1.msra.mxu0 0.0
    %1479 = vmatprep.subr.mxu0 0.0
    %1480 = vmatpush1.msra.mxu0 0.0
    %1481 = vmatprep.subr.mxu0 0.0
    %1482 = vmatpush1.msra.mxu0 0.0
    %1483 = vmatprep.subr.mxu0 0.0
    %1484 = vmatpush1.msra.mxu0 0.0
    %1485 = vmatprep.subr.mxu0 0.0
    %1486 = vmatpush1.msra.mxu0 0.0
    %1487 = vmatprep.subr.mxu0 0.0
    %1488 = vmatpush1.msra.mxu0 0.0
    %1489 = vmatprep.subr.mxu0 0.0
    %1490 = vmatpush1.msra.mxu0 0.0
    %1491 = vmatprep.mubr.f32.mxu0 0.0
    %1492 = vmatmul.mubr.f32.gmra.mrb[0].mxu0 %v1425
    %v1493 = vpop.f32.mrb[0].mxu0
    %v1494 = vadd.f32 0.0, %v1493
    %v1495 = vpop.f32.mrb[0].mxu0
    %1496 = vdwg.mxu0
    %1497 = vrot.lane.b32.xlu0 %v242, 40
    %v1498 = vpop.permute.xlu0 %1497
    %v1501 = vsel %vm251, %v1414, 0
    %1503 = vmatprep.subr.mxu0 0.0
    %1504 = vmatpush1.msra.mxu0 %v1498
    %1505 = vmatprep.subr.mxu0 0.0
    %1506 = vmatpush1.msra.mxu0 0.0
    %1507 = vmatprep.subr.mxu0 0.0
    %1508 = vmatpush1.msra.mxu0 0.0
    %1509 = vmatprep.subr.mxu0 0.0
    %1510 = vmatpush1.msra.mxu0 0.0
    %1511 = vmatprep.subr.mxu0 0.0
    %1512 = vmatpush1.msra.mxu0 0.0
    %1513 = vmatprep.subr.mxu0 0.0
    %1514 = vmatpush1.msra.mxu0 0.0
    %1515 = vmatprep.subr.mxu0 0.0
    %1516 = vmatpush1.msra.mxu0 0.0
    %1517 = vmatprep.subr.mxu0 0.0
    %1518 = vmatpush1.msra.mxu0 0.0
    %1519 = vmatprep.subr.mxu0 0.0
    %1520 = vmatpush1.msra.mxu0 0.0
    %1521 = vmatprep.subr.mxu0 0.0
    %1522 = vmatpush1.msra.mxu0 0.0
    %1523 = vmatprep.subr.mxu0 0.0
    %1524 = vmatpush1.msra.mxu0 0.0
    %1525 = vmatprep.subr.mxu0 0.0
    %1526 = vmatpush1.msra.mxu0 0.0
    %1527 = vmatprep.subr.mxu0 0.0
    %1528 = vmatpush1.msra.mxu0 0.0
    %1529 = vmatprep.subr.mxu0 0.0
    %1530 = vmatpush1.msra.mxu0 0.0
    %1531 = vmatprep.subr.mxu0 0.0
    %1532 = vmatpush1.msra.mxu0 0.0
    %1533 = vmatprep.subr.mxu0 0.0
    %1534 = vmatpush1.msra.mxu0 0.0
    %1535 = vmatprep.subr.mxu0 0.0
    %1536 = vmatpush1.msra.mxu0 0.0
    %1537 = vmatprep.subr.mxu0 0.0
    %1538 = vmatpush1.msra.mxu0 0.0
    %1539 = vmatprep.subr.mxu0 0.0
    %1540 = vmatpush1.msra.mxu0 0.0
    %1541 = vmatprep.subr.mxu0 0.0
    %1542 = vmatpush1.msra.mxu0 0.0
    %1543 = vmatprep.subr.mxu0 0.0
    %1544 = vmatpush1.msra.mxu0 0.0
    %1545 = vmatprep.subr.mxu0 0.0
    %1546 = vmatpush1.msra.mxu0 0.0
    %1547 = vmatprep.subr.mxu0 0.0
    %1548 = vmatpush1.msra.mxu0 0.0
    %1549 = vmatprep.subr.mxu0 0.0
    %1550 = vmatpush1.msra.mxu0 0.0
    %1551 = vmatprep.subr.mxu0 0.0
    %1552 = vmatpush1.msra.mxu0 0.0
    %1553 = vmatprep.subr.mxu0 0.0
    %1554 = vmatpush1.msra.mxu0 0.0
    %1555 = vmatprep.subr.mxu0 0.0
    %1556 = vmatpush1.msra.mxu0 0.0
    %1557 = vmatprep.subr.mxu0 0.0
    %1558 = vmatpush1.msra.mxu0 0.0
    %1559 = vmatprep.subr.mxu0 0.0
    %1560 = vmatpush1.msra.mxu0 0.0
    %1561 = vmatprep.subr.mxu0 0.0
    %1562 = vmatpush1.msra.mxu0 0.0
    %1563 = vmatprep.subr.mxu0 0.0
    %1564 = vmatpush1.msra.mxu0 0.0
    %1565 = vmatprep.subr.mxu0 0.0
    %1566 = vmatpush1.msra.mxu0 0.0
    %1567 = vmatprep.mubr.f32.mxu0 0.0
    %1568 = vmatmul.mubr.f32.gmra.mrb[0].mxu0 %v1501
    %v1569 = vpop.f32.mrb[0].mxu0
    %v1570 = vadd.f32 0.0, %v1569
    %v1571 = vpop.f32.mrb[0].mxu0
    %1572 = vdwg.mxu0
    %v1573 = vrcp.pop %v1417
    %v1574 = vrcp.pop %v1420
    %v1575 = vmul.f32 %v1494, %v1573
    %v1576 = vmul.f32 %v1570, %v1574
    %1579 = vrot.lane.b32.xlu0 %v911, 8
    %v1580 = vpop.permute.xlu0 %1579
    %1581 = vrot.lane.b32.xlu0 %v912, 8
    %v1582 = vpop.permute.xlu0 %1581
    %1587 = vrot.lane.b32.xlu0 %v1243, 16
    %v1588 = vpop.permute.xlu0 %1587
    %1589 = vrot.lane.b32.xlu0 %v1244, 16
    %v1590 = vpop.permute.xlu0 %1589
    %1595 = vrot.lane.b32.xlu0 %v1575, 24
    %v1596 = vpop.permute.xlu0 %1595
    %1597 = vrot.lane.b32.xlu0 %v1576, 24
    %v1598 = vpop.permute.xlu0 %1597
    %v1601 = vsel %vm251, %v579, %v1580
    %v1602 = vsel %vm251, %v580, %v1582
    %vm1603 = vcmask 130048
    %v1604 = vsel %vm1603, %v1601, %v1588
    %v1605 = vsel %vm1603, %v1602, %v1590
    %vm1606 = vcmask 195584
    %v1607 = vsel %vm1606, %v1604, %v1596
    %v1608 = vsel %vm1606, %v1605, %v1598
    %v1609 = vld [vmem:[#allocation2] sm:$0xff]
    %v1610 = vld [vmem:[#allocation2 + $0x8] sm:$0xff]
    %v1611 = vld [vmem:[#allocation2 + $0x10] sm:$0xff]
    %v1612 = vld [vmem:[#allocation2 + $0x18] sm:$0xff]
    %v1613 = vld [vmem:[%s5] sm:$0x1]
    %v1615 = vlaneseq
    %v1616 = vshrl.u32 %v1615, 7
    %v1617 = vsub.s32 0, %v1616
    %v1618 = vrot.slane %v1613, %v1617
    %v1621 = vsel %vm163, %v1607, 0
    %v1624 = vsel %vm163, %v1608, 0
    %1626 = vmatprep.subr.mxu0 0.0
    %1627 = vmatpush1.msra.mxu0 %v1609
    %1628 = vmatprep.subr.mxu0 0.0
    %1629 = vmatpush1.msra.mxu0 %v1610
    %1630 = vmatprep.subr.mxu0 0.0
    %1631 = vmatpush1.msra.mxu0 %v1611
    %1632 = vmatprep.subr.mxu0 0.0
    %1633 = vmatpush1.msra.mxu0 %v1612
    %1634 = vmatprep.subr.mxu0 0.0
    %1635 = vmatpush1.msra.mxu0 0.0
    %1636 = vmatprep.subr.mxu0 0.0
    %1637 = vmatpush1.msra.mxu0 0.0
    %1638 = vmatprep.subr.mxu0 0.0
    %1639 = vmatpush1.msra.mxu0 0.0
    %1640 = vmatprep.subr.mxu0 0.0
    %1641 = vmatpush1.msra.mxu0 0.0
    %1642 = vmatprep.subr.mxu0 0.0
    %1643 = vmatpush1.msra.mxu0 0.0
    %1644 = vmatprep.subr.mxu0 0.0
    %1645 = vmatpush1.msra.mxu0 0.0
    %1646 = vmatprep.subr.mxu0 0.0
    %1647 = vmatpush1.msra.mxu0 0.0
    %1648 = vmatprep.subr.mxu0 0.0
    %1649 = vmatpush1.msra.mxu0 0.0
    %1650 = vmatprep.subr.mxu0 0.0
    %1651 = vmatpush1.msra.mxu0 0.0
    %1652 = vmatprep.subr.mxu0 0.0
    %1653 = vmatpush1.msra.mxu0 0.0
    %1654 = vmatprep.subr.mxu0 0.0
    %1655 = vmatpush1.msra.mxu0 0.0
    %1656 = vmatprep.subr.mxu0 0.0
    %1657 = vmatpush1.msra.mxu0 0.0
    %1658 = vmatprep.subr.mxu0 0.0
    %1659 = vmatpush1.msra.mxu0 0.0
    %1660 = vmatprep.subr.mxu0 0.0
    %1661 = vmatpush1.msra.mxu0 0.0
    %1662 = vmatprep.subr.mxu0 0.0
    %1663 = vmatpush1.msra.mxu0 0.0
    %1664 = vmatprep.subr.mxu0 0.0
    %1665 = vmatpush1.msra.mxu0 0.0
    %1666 = vmatprep.subr.mxu0 0.0
    %1667 = vmatpush1.msra.mxu0 0.0
    %1668 = vmatprep.subr.mxu0 0.0
    %1669 = vmatpush1.msra.mxu0 0.0
    %1670 = vmatprep.subr.mxu0 0.0
    %1671 = vmatpush1.msra.mxu0 0.0
    %1672 = vmatprep.subr.mxu0 0.0
    %1673 = vmatpush1.msra.mxu0 0.0
    %1674 = vmatprep.subr.mxu0 0.0
    %1675 = vmatpush1.msra.mxu0 0.0
    %1676 = vmatprep.subr.mxu0 0.0
    %1677 = vmatpush1.msra.mxu0 0.0
    %1678 = vmatprep.subr.mxu0 0.0
    %1679 = vmatpush1.msra.mxu0 0.0
    %1680 = vmatprep.subr.mxu0 0.0
    %1681 = vmatpush1.msra.mxu0 0.0
    %1682 = vmatprep.subr.mxu0 0.0
    %1683 = vmatpush1.msra.mxu0 0.0
    %1684 = vmatprep.subr.mxu0 0.0
    %1685 = vmatpush1.msra.mxu0 0.0
    %1686 = vmatprep.subr.mxu0 0.0
    %1687 = vmatpush1.msra.mxu0 0.0
    %1688 = vmatprep.subr.mxu0 0.0
    %1689 = vmatpush1.msra.mxu0 0.0
    %1690 = vmatprep.mubr.f32.mxu0 0.0
    %1691 = vmatmul.mubr.f32.gmra.mrb[0].mxu0 %v1621
    %v1692 = vpop.f32.mrb[0].mxu0
    %v1693 = vadd.f32 %v1618, %v1692
    %v1694 = vpop.f32.mrb[0].mxu0
    %1695 = vmatprep.mubr.f32.mxu0 0.0
    %1696 = vmatmul.mubr.f32.gmra.mrb[0].mxu0 %v1624
    %v1697 = vpop.f32.mrb[0].mxu0
    %v1698 = vadd.f32 %v1618, %v1697
    %v1699 = vpop.f32.mrb[0].mxu0
    %1700 = vdwg.mxu0
    %v1701 = vmax.f32 %v1693, 0.0
    %v1702 = vmax.f32 %v1698, 0.0
    %v1703 = vld [vmem:[%s6] sm:$0xff]
    %v1704 = vld [vmem:[%s6 + $0x8] sm:$0xff]
    %v1705 = vld [vmem:[%s6 + $0x10] sm:$0xff]
    %v1706 = vld [vmem:[%s6 + $0x18] sm:$0xff]
    %v1707 = vld [vmem:[%s6 + $0x20] sm:$0xff]
    %v1708 = vld [vmem:[%s6 + $0x28] sm:$0xff]
    %v1709 = vld [vmem:[%s6 + $0x30] sm:$0xff]
    %v1710 = vld [vmem:[%s6 + $0x38] sm:$0xff]
    %v1711 = vld [vmem:[%s6 + $0x40] sm:$0xff]
    %v1712 = vld [vmem:[%s6 + $0x48] sm:$0xff]
    %v1713 = vld [vmem:[%s6 + $0x50] sm:$0xff]
    %v1714 = vld [vmem:[%s6 + $0x58] sm:$0xff]
    %v1715 = vld [vmem:[%s6 + $0x60] sm:$0xff]
    %v1716 = vld [vmem:[%s6 + $0x68] sm:$0xff]
    %v1717 = vld [vmem:[%s6 + $0x70] sm:$0xff]
    %v1718 = vld [vmem:[%s6 + $0x78] sm:$0xff]
    %v1719 = vld [vmem:[%s7] sm:$0x1]
    %v1721 = vlaneseq
    %v1722 = vshrl.u32 %v1721, 7
    %v1723 = vsub.s32 0, %v1722
    %v1724 = vrot.slane %v1719, %v1723
    %1726 = vmatprep.subr.mxu0 0.0
    %1727 = vmatpush1.msra.mxu0 %v1703
    %1728 = vmatprep.subr.mxu0 0.0
    %1729 = vmatpush1.msra.mxu0 %v1704
    %1730 = vmatprep.subr.mxu0 0.0
    %1731 = vmatpush1.msra.mxu0 %v1705
    %1732 = vmatprep.subr.mxu0 0.0
    %1733 = vmatpush1.msra.mxu0 %v1706
    %1734 = vmatprep.subr.mxu0 0.0
    %1735 = vmatpush1.msra.mxu0 %v1707
    %1736 = vmatprep.subr.mxu0 0.0
    %1737 = vmatpush1.msra.mxu0 %v1708
    %1738 = vmatprep.subr.mxu0 0.0
    %1739 = vmatpush1.msra.mxu0 %v1709
    %1740 = vmatprep.subr.mxu0 0.0
    %1741 = vmatpush1.msra.mxu0 %v1710
    %1742 = vmatprep.subr.mxu0 0.0
    %1743 = vmatpush1.msra.mxu0 %v1711
    %1744 = vmatprep.subr.mxu0 0.0
    %1745 = vmatpush1.msra.mxu0 %v1712
    %1746 = vmatprep.subr.mxu0 0.0
    %1747 = vmatpush1.msra.mxu0 %v1713
    %1748 = vmatprep.subr.mxu0 0.0
    %1749 = vmatpush1.msra.mxu0 %v1714
    %1750 = vmatprep.subr.mxu0 0.0
    %1751 = vmatpush1.msra.mxu0 %v1715
    %1752 = vmatprep.subr.mxu0 0.0
    %1753 = vmatpush1.msra.mxu0 %v1716
    %1754 = vmatprep.subr.mxu0 0.0
    %1755 = vmatpush1.msra.mxu0 %v1717
    %1756 = vmatprep.subr.mxu0 0.0
    %1757 = vmatpush1.msra.mxu0 %v1718
    %1758 = vmatprep.subr.mxu0 0.0
    %1759 = vmatpush1.msra.mxu0 0.0
    %1760 = vmatprep.subr.mxu0 0.0
    %1761 = vmatpush1.msra.mxu0 0.0
    %1762 = vmatprep.subr.mxu0 0.0
    %1763 = vmatpush1.msra.mxu0 0.0
    %1764 = vmatprep.subr.mxu0 0.0
    %1765 = vmatpush1.msra.mxu0 0.0
    %1766 = vmatprep.subr.mxu0 0.0
    %1767 = vmatpush1.msra.mxu0 0.0
    %1768 = vmatprep.subr.mxu0 0.0
    %1769 = vmatpush1.msra.mxu0 0.0
    %1770 = vmatprep.subr.mxu0 0.0
    %1771 = vmatpush1.msra.mxu0 0.0
    %1772 = vmatprep.subr.mxu0 0.0
    %1773 = vmatpush1.msra.mxu0 0.0
    %1774 = vmatprep.subr.mxu0 0.0
    %1775 = vmatpush1.msra.mxu0 0.0
    %1776 = vmatprep.subr.mxu0 0.0
    %1777 = vmatpush1.msra.mxu0 0.0
    %1778 = vmatprep.subr.mxu0 0.0
    %1779 = vmatpush1.msra.mxu0 0.0
    %1780 = vmatprep.subr.mxu0 0.0
    %1781 = vmatpush1.msra.mxu0 0.0
    %1782 = vmatprep.subr.mxu0 0.0
    %1783 = vmatpush1.msra.mxu0 0.0
    %1784 = vmatprep.subr.mxu0 0.0
    %1785 = vmatpush1.msra.mxu0 0.0
    %1786 = vmatprep.subr.mxu0 0.0
    %1787 = vmatpush1.msra.mxu0 0.0
    %1788 = vmatprep.subr.mxu0 0.0
    %1789 = vmatpush1.msra.mxu0 0.0
    %1790 = vmatprep.mubr.f32.mxu0 0.0
    %1791 = vmatmul.mubr.f32.gmra.mrb[0].mxu0 %v1701
    %v1792 = vpop.f32.mrb[0].mxu0
    %v1793 = vadd.f32 %v1724, %v1792
    %v1794 = vpop.f32.mrb[0].mxu0
    %1795 = vmatprep.mubr.f32.mxu0 0.0
    %1796 = vmatmul.mubr.f32.gmra.mrb[0].mxu0 %v1702
    %v1797 = vpop.f32.mrb[0].mxu0
    %v1798 = vadd.f32 %v1724, %v1797
    %v1799 = vpop.f32.mrb[0].mxu0
    %1800 = vdwg.mxu0
    %1801 = vst [vmem:[#allocation5] sm:$0xff] %v1793
    %1802 = vst [vmem:[#allocation5 + $0x8] sm:$0xff] %v1798
    // Predicated region
    $region38: #{tpu_custom_call.1} parent=1 // pred_check
      _
    $region39: #{tpu_custom_call.1} parent=1 // pred_check_branch
      %1804 = sbr.rel (0) target = $region41
    $region40: #{tpu_custom_call.1} parent=1 // pred_region
      %s1806 = ssub.s32 256, 256
      %1807 = vsyncadd [#allocation4], %s1806
      %s1808 = sshll.u32 [#allocation5], 4
      %s1809 = int_to_ptr.vmem [resolvable:$true] %s1808
      %1814 = dma.vmem_to_hbm [thread:$0]  %s1809, 256, %s8, [#allocation4], 128, 128, 8
    $region41: #{tpu_custom_call.1} parent=1 // pred_fallthru
      _
    // Predicated region
    $region42: #{tpu_custom_call.1} parent=1 // pred_check
      _
    $region43: #{tpu_custom_call.1} parent=1 // pred_check_branch
      %1816 = sbr.rel (0) target = $region45
    $region44: #{tpu_custom_call.1} parent=1 // pred_region
      %1817 = dma.done [#allocation4], 256
    $region45: #{tpu_custom_call.1} parent=1 // pred_fallthru
      _
    %1818 = vsyncpa [#allocation3], 1
    %1819 = vsyncpa [#allocation4], 1

</llo_original>
